<compile_context>
chip_gen: v6e
topology: v6e:2x2x1
jax: 0.10.0
libtpu: 0.0.40
codegen_flags: <defaults>
</compile_context>

<pallas_src>
import functools

import jax
import jax.numpy as jnp
import numpy as np
from jax import lax
from jax.experimental import pallas as pl
from jax.experimental.pallas import tpu as pltpu

NEG_SLOPE = 0.01  # torch leaky_relu default
LANE = 128
SUBLANE = 8


def _round_up(x, m):
    return ((x + m - 1) // m) * m


def _pick_batch_group(bp, prefer_split=False):
    """Largest of (32,16,8) dividing bp; prefer_split keeps >=2 grid steps."""
    cands = (32, 16, 8)
    if prefer_split:
        split = tuple(c for c in cands if bp % c == 0 and bp // c >= 2)
        if split:
            return split[0]
    for c in cands:
        if bp % c == 0:
            return c
    return SUBLANE


# --------------------------------------------------------------------------
# Fused conv1+bn1+lrelu -> conv2+bn2+lrelu -> conv3+bn3+lrelu.
# One grid step per BT-batch group; everything stays time-major (Lin, BT, C)
# so every reshape is a free sublane-aligned merge and the output lands
# directly in the GRU's (T, Bp, 256) layout (lane-dense 256-wide stores).
# Each conv is ONE MXU matmul: (BT*Lout, K*Cin) x (K*Cin, Cout).
# --------------------------------------------------------------------------
def _fused_conv_kernel(x_ref, w1_ref, s1_ref, b1_ref, w2_ref, s2_ref, b2_ref,
                       w3_ref, s3_ref, b3_ref, o_ref, *, BT, K1, K2, K3):
    L = x_ref.shape[0]
    L1 = L - K1 + 1
    L2 = L1 - K2 + 1
    L3 = L2 - K3 + 1

    def conv_block(h, K, Lout, w_ref, s_ref, b_ref):
        # h: (Lin, BT, Cin) time-major.  im2col along lanes, one big matmul.
        cols = jnp.concatenate([h[j:j + Lout] for j in range(K)], axis=2)
        cols = cols.reshape(Lout * BT, cols.shape[-1])     # free (BT % 8 == 0)
        y = jnp.dot(cols, w_ref[...], preferred_element_type=jnp.float32)
        y = y * s_ref[...] + b_ref[...]                    # folded BatchNorm (f32)
        y = jnp.where(y > 0, y, NEG_SLOPE * y)             # leaky_relu (f32)
        return y.reshape(Lout, BT, w_ref.shape[1])

    y1 = conv_block(x_ref[...], K1, L1, w1_ref, s1_ref, b1_ref).astype(jnp.bfloat16)
    y2 = conv_block(y1, K2, L2, w2_ref, s2_ref, b2_ref).astype(jnp.bfloat16)
    y3 = conv_block(y2, K3, L3, w3_ref, s3_ref, b3_ref)
    o_ref[...] = y3.astype(o_ref.dtype)                    # (L3, BT, C3) time-major


def fused_conv_bn_lrelu(x, conv_params, BT):
    """x: (L, Bp, Ep) bf16 time-major (Ep lane-padded).  Returns (T, Bp, C3) bf16."""
    L, Bp, Ep = x.shape
    (w1, s1, b1), (w2, s2, b2), (w3, s3, b3) = conv_params
    K1 = w1.shape[0] // Ep
    C1 = w1.shape[1]
    K2 = w2.shape[0] // C1
    C2 = w2.shape[1]
    K3 = w3.shape[0] // C2
    C3 = w3.shape[1]
    L1 = L - K1 + 1
    L2 = L1 - K2 + 1
    L3 = L2 - K3 + 1

    kern = functools.partial(_fused_conv_kernel, BT=BT, K1=K1, K2=K2, K3=K3)
    flops = 2 * Bp * (L1 * w1.shape[0] * C1 + L2 * w2.shape[0] * C2
                      + L3 * w3.shape[0] * C3)
    bytes_accessed = int(x.nbytes + w1.nbytes + w2.nbytes + w3.nbytes
                         + s1.nbytes + s2.nbytes + s3.nbytes
                         + b1.nbytes + b2.nbytes + b3.nbytes
                         + L3 * Bp * C3 * 2)

    def wspec(a):
        return pl.BlockSpec(a.shape, lambda g: (0, 0))

    return pl.pallas_call(
        kern,
        out_shape=jax.ShapeDtypeStruct((L3, Bp, C3), jnp.bfloat16),
        grid=(Bp // BT,),
        in_specs=[
            pl.BlockSpec((L, BT, Ep), lambda g: (0, g, 0)),
            wspec(w1), wspec(s1), wspec(b1),
            wspec(w2), wspec(s2), wspec(b2),
            wspec(w3), wspec(s3), wspec(b3),
        ],
        out_specs=pl.BlockSpec((L3, BT, C3), lambda g: (0, g, 0)),
        compiler_params=pltpu.CompilerParams(
            dimension_semantics=("parallel",)),
        cost_estimate=pl.CostEstimate(
            flops=int(flops), transcendentals=0, bytes_accessed=bytes_accessed),
    )(x, w1, s1, b1, w2, s2, b2, w3, s3, b3)


# --------------------------------------------------------------------------
# Multi-layer GRU + final Linear, one kernel, "parallel" grid over BG-batch
# groups (megacore on v7x; bounded per-group scratch).
#   - per layer, gi = X @ Wih + bih is ONE (T*BG, Cin) x (Cin, 3*Hp) MXU
#     matmul over the whole sequence into a (T*BG, 3*Hp) f32 VMEM scratch;
#   - the unrolled time loop only does gh = h @ Whh (+bhh) + gate math;
#   - gates are [r|z|n], each padded to Hp=128 lanes -> lane-aligned slices;
#   - per-step layer outputs go to a bf16 (T*BG, Hp) scratch except for the
#     last layer (only h_T is needed); the FC is computed in-kernel with a
#     lane-dense (BG, 128) output.
# --------------------------------------------------------------------------
def make_gru_fc_kernel(num_layers, T, BG, Hp):
    def kernel(*args):
        x_ref = args[0]                               # (T, BG, Cin) bf16, time-major
        layers = [args[1 + 4 * l: 5 + 4 * l] for l in range(num_layers)]
        fcw_ref = args[1 + 4 * num_layers]
        fcb_ref = args[2 + 4 * num_layers]
        o_ref = args[3 + 4 * num_layers]
        gi_buf = args[4 + 4 * num_layers]             # (T*BG, 3*Hp) f32 scratch
        seq_buf = args[5 + 4 * num_layers]            # (T*BG, Hp)   bf16 scratch

        unroll = True if T <= 32 else 4               # cross-iteration visibility

        def run_layer(l, in_seq, wih_ref, whh_ref, bih_ref, bhh_ref):
            # Hoisted input projection: one (T*BG, Cin) x (Cin, 3*Hp) matmul.
            gi_buf[...] = (
                jnp.dot(in_seq, wih_ref[...], preferred_element_type=jnp.float32)
                + bih_ref[...]
            )
            whh = whh_ref[...]
            bhh = bhh_ref[...]
            write_out = l < num_layers - 1            # last layer: only h_T needed

            # TODO(synk): if the bundle dump shows the Whh weight push re-issued
            # every iteration, hold it in the MXU via pltpu.matmul_push_rhs (once
            # per layer) + matmul_acc_lhs / matmul_pop per step.
            def body(t, h):
                row = pl.multiple_of(t * BG, BG)
                gi = gi_buf[pl.ds(row, BG), :]
                gh = (jnp.dot(h.astype(jnp.bfloat16), whh,
                              preferred_element_type=jnp.float32) + bhh)
                # lane-aligned gate slices (each gate occupies Hp = 128 lanes)
                r = jax.nn.sigmoid(gi[:, 0:Hp] + gh[:, 0:Hp])
                z = jax.nn.sigmoid(gi[:, Hp:2 * Hp] + gh[:, Hp:2 * Hp])
                n = jnp.tanh(gi[:, 2 * Hp:3 * Hp] + r * gh[:, 2 * Hp:3 * Hp])
                h_new = (1.0 - z) * n + z * h
                if write_out:
                    seq_buf[pl.ds(row, BG), :] = h_new.astype(jnp.bfloat16)
                return h_new

            return lax.fori_loop(0, T, body, jnp.zeros((BG, Hp), jnp.float32),
                                 unroll=unroll)

        h_last = None
        for l in range(num_layers):
            if l == 0:
                cin = x_ref.shape[-1]
                in_seq = x_ref[...].reshape(T * BG, cin)   # free merge (BG % 8 == 0)
            else:
                in_seq = seq_buf[...]                      # already bf16
            h_last = run_layer(l, in_seq, *layers[l])

        # Dropout(0.5) on the last time step is identity in eval mode.
        o_ref[...] = (
            jnp.dot(h_last.astype(jnp.bfloat16), fcw_ref[...],
                    preferred_element_type=jnp.float32)
            + fcb_ref[...]
        )

    return kernel


def gru_fc(x_tmaj, gru_layers, fc_w, fc_b, Bp, BG, Hp):
    """x_tmaj: (T, Bp, Cin) bf16, time-major (row = t*Bp + b after merge)."""
    T, _, Cin = x_tmaj.shape
    num_layers = len(gru_layers)
    flat = [x_tmaj]
    for p in gru_layers:
        flat += list(p)
    flat += [fc_w, fc_b]

    def bcast(a):
        return pl.BlockSpec(a.shape, lambda g, _nd=a.ndim: (0,) * _nd)

    in_specs = [pl.BlockSpec((T, BG, Cin), lambda g: (0, g, 0))]
    in_specs += [bcast(a) for a in flat[1:]]
    out_specs = pl.BlockSpec((BG, LANE), lambda g: (g, 0))

    flops = 2 * Bp * fc_w.shape[0] * fc_w.shape[1]
    for (wih, whh, _, _) in gru_layers:
        flops += 2 * T * Bp * (wih.shape[0] * wih.shape[1]
                               + whh.shape[0] * whh.shape[1])
    trans = num_layers * T * Bp * 3 * Hp
    bytes_accessed = sum(int(a.nbytes) for a in flat) + Bp * LANE * 4

    # VMEM budget derived from actual usage (scratch + double-buffered blocks).
    scratch_bytes = T * BG * 3 * Hp * 4 + T * BG * Hp * 2
    buf_bytes = 2 * sum(int(a.nbytes) for a in flat[1:])        # resident weights
    buf_bytes += 2 * (T * BG * Cin * 2) + 2 * (BG * LANE * 4)   # x / out blocks
    vmem_limit = max(16 << 20, min(scratch_bytes + buf_bytes + (4 << 20), 112 << 20))

    return pl.pallas_call(
        make_gru_fc_kernel(num_layers, T, BG, Hp),
        out_shape=jax.ShapeDtypeStruct((Bp, LANE), jnp.float32),
        grid=(Bp // BG,),
        in_specs=in_specs,
        out_specs=out_specs,
        scratch_shapes=[
            pltpu.VMEM((T * BG, 3 * Hp), jnp.float32),   # hoisted gi (per group)
            pltpu.VMEM((T * BG, Hp), jnp.bfloat16),      # layer outputs (bf16)
        ],
        compiler_params=pltpu.CompilerParams(
            dimension_semantics=("parallel",),
            vmem_limit_bytes=int(vmem_limit)),
        cost_estimate=pl.CostEstimate(
            flops=int(flops), transcendentals=int(trans),
            bytes_accessed=int(bytes_accessed)),
    )(*flat)


# --------------------------------------------------------------------------
# Full forward pass (glue in plain JAX: padded embedding gather only).
# --------------------------------------------------------------------------
def seq_classifier_forward(x_idx, prep):
    B, L = x_idx.shape
    Bp = _round_up(B, SUBLANE)                         # sublane-dense batch
    # Pad token ids with padding_idx=0; padded rows flow through both kernels
    # with finite values and are sliced off at the end.  Transposing the tiny
    # int32 index array makes the embedding gather produce time-major output.
    idx_p = jnp.zeros((Bp, L), x_idx.dtype).at[:B].set(x_idx)
    h = prep["embedding"][idx_p.T]                     # (L, Bp, Ep) bf16, time-major
    BT = _pick_batch_group(Bp)                         # conv: maximize matmul M rows
    conv_out = fused_conv_bn_lrelu(h, prep["convs"], BT)   # (T, Bp, 256) bf16
    BG = _pick_batch_group(Bp, prefer_split=True)      # GRU: >=2 groups for megacore
    out = gru_fc(conv_out, prep["gru"], prep["fc_w"], prep["fc_b"], Bp, BG, prep["Hp"])
    return out[:B, :1]                                 # un-pad batch / FC lanes


# --------------------------------------------------------------------------
# Deterministic synthetic parameter init (logical, PyTorch-equivalent shapes)
# and repacking into the padded bf16 kernel layout.
# --------------------------------------------------------------------------
def init_params(key, vocab_size, embed_dim, hidden_dim, num_layers):
    keys = iter(jax.random.split(key, 64))
    nrm = lambda k, shape, s=0.1: jax.random.normal(k, shape, jnp.float32) * s

    emb = nrm(next(keys), (vocab_size, embed_dim))
    emb = emb.at[0].set(0.0)  # padding_idx=0

    eps = 1e-5
    convs = []
    for (cin, cout, k) in [(embed_dim, 64, 5), (64, 128, 3), (128, 256, 3)]:
        w = nrm(next(keys), (k, cin, cout))
        b = nrm(next(keys), (cout,))
        gamma = 1.0 + nrm(next(keys), (cout,))
        beta = nrm(next(keys), (cout,))
        mean = nrm(next(keys), (cout,))
        var = jnp.abs(nrm(next(keys), (cout,))) + 1.0
        scale = gamma / jnp.sqrt(var + eps)        # BatchNorm folded (eval mode)
        shift = (b - mean) * scale + beta
        convs.append((w, scale, shift))

    H = hidden_dim
    gru = []
    in_dim = 256
    for _ in range(num_layers):
        gru.append((
            nrm(next(keys), (in_dim, 3 * H)),  # W_ih^T, gate order [r|z|n]
            nrm(next(keys), (H, 3 * H)),       # W_hh^T
            nrm(next(keys), (1, 3 * H)),       # b_ih
            nrm(next(keys), (1, 3 * H)),       # b_hh
        ))
        in_dim = H

    fc_w = nrm(next(keys), (H, 1))
    fc_b = nrm(next(keys), (1, 1))
    return {"embedding": emb, "convs": convs, "gru": gru,
            "fc_w": fc_w, "fc_b": fc_b, "H": H}


def prepare_params(p):
    """Repack logical params into the MXU/lane-friendly kernel layout:
    bf16 weights, f32 scale/shift/bias, channel + gate dims padded to 128."""
    H = p["H"]
    Hp = _round_up(H, LANE)
    emb = p["embedding"]
    V, E = emb.shape
    Ep = _round_up(E, LANE)
    emb_p = jnp.zeros((V, Ep), jnp.float32).at[:, :E].set(emb).astype(jnp.bfloat16)

    def prep_conv(w, scale, shift, cin_pad, cout_pad):
        K, Cin, Cout = w.shape
        wp = jnp.zeros((K * cin_pad, cout_pad), jnp.float32)
        for j in range(K):  # row order must match the kernel's im2col concat
            wp = wp.at[j * cin_pad:j * cin_pad + Cin, :Cout].set(w[j])
        sp = jnp.zeros((1, cout_pad), jnp.float32).at[:, :Cout].set(scale.reshape(1, Cout))
        bp = jnp.zeros((1, cout_pad), jnp.float32).at[:, :Cout].set(shift.reshape(1, Cout))
        return wp.astype(jnp.bfloat16), sp, bp

    (w1, s1, b1), (w2, s2, b2), (w3, s3, b3) = p["convs"]
    c1 = _round_up(w1.shape[2], LANE)   # 64 -> 128 (lane-dense intermediate)
    c2 = _round_up(w2.shape[2], LANE)   # 128
    c3 = _round_up(w3.shape[2], LANE)   # 256
    convs = [prep_conv(w1, s1, b1, Ep, c1),
             prep_conv(w2, s2, b2, c1, c2),
             prep_conv(w3, s3, b3, c2, c3)]

    def prep_gru(wih, whh, bih, bhh, cin, cin_pad):
        wih_p = jnp.zeros((cin_pad, 3 * Hp), jnp.float32)
        whh_p = jnp.zeros((Hp, 3 * Hp), jnp.float32)
        bih_p = jnp.zeros((1, 3 * Hp), jnp.float32)
        bhh_p = jnp.zeros((1, 3 * Hp), jnp.float32)
        for g in range(3):  # lane-aligned gates: each gate padded to Hp lanes
            wih_p = wih_p.at[:cin, g * Hp:g * Hp + H].set(wih[:, g * H:(g + 1) * H])
            whh_p = whh_p.at[:H, g * Hp:g * Hp + H].set(whh[:, g * H:(g + 1) * H])
            bih_p = bih_p.at[:, g * Hp:g * Hp + H].set(bih[:, g * H:(g + 1) * H])
            bhh_p = bhh_p.at[:, g * Hp:g * Hp + H].set(bhh[:, g * H:(g + 1) * H])
        return wih_p.astype(jnp.bfloat16), whh_p.astype(jnp.bfloat16), bih_p, bhh_p

    gru = []
    cin, cin_pad = w3.shape[2], c3
    for (wih, whh, bih, bhh) in p["gru"]:
        gru.append(prep_gru(wih, whh, bih, bhh, cin, cin_pad))
        cin, cin_pad = H, Hp

    fc_w = (jnp.zeros((Hp, LANE), jnp.float32).at[:H, :1].set(p["fc_w"])
            .astype(jnp.bfloat16))
    fc_b = jnp.zeros((1, LANE), jnp.float32).at[:, :1].set(p["fc_b"])

    return {"embedding": emb_p, "convs": convs, "gru": gru,
            "fc_w": fc_w, "fc_b": fc_b, "H": H, "Hp": Hp}


# --------------------------------------------------------------------------
# Pure-JAX reference (logical params, same bf16 operand rounding as kernels).
# --------------------------------------------------------------------------
def _bf16(x):
    return x.astype(jnp.bfloat16).astype(jnp.float32)


def ref_forward(x_idx, params):
    h = _bf16(params["embedding"][x_idx])                 # (B, L, E)
    for (w, scale, shift) in params["convs"]:
        K, _, Cout = w.shape
        Lout = h.shape[1] - K + 1
        wb = _bf16(w)
        acc = jnp.zeros((h.shape[0], Lout, Cout), jnp.float32)
        for j in range(K):
            acc = acc + jnp.einsum("blc,cd->bld", h[:, j:j + Lout, :], wb[j])
        y = acc * scale.reshape(1, 1, -1) + shift.reshape(1, 1, -1)
        h = _bf16(jnp.where(y > 0, y, NEG_SLOPE * y))

    H = params["H"]
    seq = h                                               # (B, T, 256)
    hs = None
    for (wih, whh, bih, bhh) in params["gru"]:
        B, T, _ = seq.shape
        wihb, whhb = _bf16(wih), _bf16(whh)
        hs = jnp.zeros((B, H), jnp.float32)
        outs = []
        for t in range(T):
            gi = seq[:, t, :] @ wihb + bih
            gh = _bf16(hs) @ whhb + bhh
            r = jax.nn.sigmoid(gi[:, :H] + gh[:, :H])
            z = jax.nn.sigmoid(gi[:, H:2 * H] + gh[:, H:2 * H])
            n = jnp.tanh(gi[:, 2 * H:] + r * gh[:, 2 * H:])
            hs = (1.0 - z) * n + z * hs
            outs.append(hs)
        seq = _bf16(jnp.stack(outs, axis=1))
    return _bf16(hs) @ _bf16(params["fc_w"]) + params["fc_b"]


if __name__ == "__main__":
    vocab_size, embed_dim, hidden_dim, num_layers = 50, 32, 32, 2
    B, L = 2, 16

    key = jax.random.PRNGKey(0)
    kp, kx = jax.random.split(key)
    params = init_params(kp, vocab_size, embed_dim, hidden_dim, num_layers)
    prep = prepare_params(params)
    x_idx = jax.random.randint(kx, (B, L), 0, vocab_size, dtype=jnp.int32)

    out = seq_classifier_forward(x_idx, prep)
    out = jax.block_until_ready(out)
    assert out.shape == (B, 1)

    ref = ref_forward(x_idx, params)
    np.testing.assert_allclose(np.asarray(out), np.asarray(ref), rtol=2e-3, atol=2e-3)
    print("KERNEL_OK")
</pallas_src>

<mosaic_0001>
module attributes {stable_mosaic.version = 11 : i64} {
  func.func @_fused_conv_kernel(%arg0: i32, %arg1: memref<16x8x128xbf16, #tpu.memory_space<vmem>>, %arg2: memref<640x128xbf16, #tpu.memory_space<vmem>>, %arg3: memref<1x128xf32, #tpu.memory_space<vmem>>, %arg4: memref<1x128xf32, #tpu.memory_space<vmem>>, %arg5: memref<384x128xbf16, #tpu.memory_space<vmem>>, %arg6: memref<1x128xf32, #tpu.memory_space<vmem>>, %arg7: memref<1x128xf32, #tpu.memory_space<vmem>>, %arg8: memref<384x256xbf16, #tpu.memory_space<vmem>>, %arg9: memref<1x256xf32, #tpu.memory_space<vmem>>, %arg10: memref<1x256xf32, #tpu.memory_space<vmem>>, %arg11: memref<8x8x256xbf16, #tpu.memory_space<vmem>>) attributes {dimension_semantics = [#tpu.dimension_semantics<parallel>], iteration_bounds = array<i64: 1>, scalar_prefetch = 0 : i64, scratch_operands = 0 : i64, tpu.core_type = #tpu.core_type<tc>, window_params = [{transform_indices = @transform_0, window_bounds = array<i64: 16, 8, 128>}, {pipeline_mode = #tpu.pipeline_mode<synchronous>, transform_indices = @transform_1, window_bounds = array<i64: 640, 128>}, {pipeline_mode = #tpu.pipeline_mode<synchronous>, transform_indices = @transform_2, window_bounds = array<i64: 1, 128>}, {pipeline_mode = #tpu.pipeline_mode<synchronous>, transform_indices = @transform_3, window_bounds = array<i64: 1, 128>}, {pipeline_mode = #tpu.pipeline_mode<synchronous>, transform_indices = @transform_4, window_bounds = array<i64: 384, 128>}, {pipeline_mode = #tpu.pipeline_mode<synchronous>, transform_indices = @transform_5, window_bounds = array<i64: 1, 128>}, {pipeline_mode = #tpu.pipeline_mode<synchronous>, transform_indices = @transform_6, window_bounds = array<i64: 1, 128>}, {pipeline_mode = #tpu.pipeline_mode<synchronous>, transform_indices = @transform_7, window_bounds = array<i64: 384, 256>}, {pipeline_mode = #tpu.pipeline_mode<synchronous>, transform_indices = @transform_8, window_bounds = array<i64: 1, 256>}, {pipeline_mode = #tpu.pipeline_mode<synchronous>, transform_indices = @transform_9, window_bounds = array<i64: 1, 256>}, {transform_indices = @transform_10, window_bounds = array<i64: 8, 8, 256>}]} {
    %c0 = arith.constant 0 : index
    %c0_0 = arith.constant 0 : index
    %c0_1 = arith.constant 0 : index
    %0 = vector.load %arg1[%c0, %c0_0, %c0_1] : memref<16x8x128xbf16, #tpu.memory_space<vmem>>, vector<16x8x128xbf16>
    %1 = vector.extract_strided_slice %0 {offsets = [0, 0, 0], sizes = [12, 8, 128], strides = [1, 1, 1]} : vector<16x8x128xbf16> to vector<12x8x128xbf16>
    %2 = vector.extract_strided_slice %0 {offsets = [1, 0, 0], sizes = [12, 8, 128], strides = [1, 1, 1]} : vector<16x8x128xbf16> to vector<12x8x128xbf16>
    %3 = vector.extract_strided_slice %0 {offsets = [2, 0, 0], sizes = [12, 8, 128], strides = [1, 1, 1]} : vector<16x8x128xbf16> to vector<12x8x128xbf16>
    %4 = vector.extract_strided_slice %0 {offsets = [3, 0, 0], sizes = [12, 8, 128], strides = [1, 1, 1]} : vector<16x8x128xbf16> to vector<12x8x128xbf16>
    %5 = vector.extract_strided_slice %0 {offsets = [4, 0, 0], sizes = [12, 8, 128], strides = [1, 1, 1]} : vector<16x8x128xbf16> to vector<12x8x128xbf16>
    %6 = tpu.concatenate %1, %2, %3, %4, %5 in 2 : vector<12x8x128xbf16>, vector<12x8x128xbf16>, vector<12x8x128xbf16>, vector<12x8x128xbf16>, vector<12x8x128xbf16> -> vector<12x8x640xbf16>
    %7 = vector.shape_cast %6 : vector<12x8x640xbf16> to vector<96x640xbf16>
    %c0_2 = arith.constant 0 : index
    %c0_3 = arith.constant 0 : index
    %8 = vector.load %arg2[%c0_2, %c0_3] : memref<640x128xbf16, #tpu.memory_space<vmem>>, vector<640x128xbf16>
    %cst = arith.constant dense<0.000000e+00> : vector<96x128xf32>
    %9 = tpu.matmul %7, %8, %cst {dimension_numbers = #tpu.dot_dimension_numbers<[1], [0], [0], [1], [0, 0, 1, 1], [], []>} : vector<96x640xbf16>, vector<640x128xbf16>, vector<96x128xf32> -> vector<96x128xf32>
    %c0_4 = arith.constant 0 : index
    %c0_5 = arith.constant 0 : index
    %10 = vector.load %arg3[%c0_4, %c0_5] : memref<1x128xf32, #tpu.memory_space<vmem>>, vector<1x128xf32>
    %11 = vector.broadcast %10 : vector<1x128xf32> to vector<96x128xf32>
    %12 = arith.mulf %9, %11 : vector<96x128xf32>
    %c0_6 = arith.constant 0 : index
    %c0_7 = arith.constant 0 : index
    %13 = vector.load %arg4[%c0_6, %c0_7] : memref<1x128xf32, #tpu.memory_space<vmem>>, vector<1x128xf32>
    %14 = vector.broadcast %13 : vector<1x128xf32> to vector<96x128xf32>
    %15 = arith.addf %12, %14 : vector<96x128xf32>
    %cst_8 = arith.constant 0.000000e+00 : f32
    %16 = vector.broadcast %cst_8 : f32 to vector<96x128xf32>
    %17 = arith.cmpf ogt, %15, %16 : vector<96x128xf32>
    %cst_9 = arith.constant 0.00999999977 : f32
    %18 = vector.broadcast %cst_9 : f32 to vector<96x128xf32>
    %19 = arith.mulf %18, %15 : vector<96x128xf32>
    %20 = arith.select %17, %15, %19 : vector<96x128xi1>, vector<96x128xf32>
    %21 = vector.shape_cast %20 : vector<96x128xf32> to vector<12x8x128xf32>
    %22 = arith.truncf %21 : vector<12x8x128xf32> to vector<12x8x128xbf16>
    %23 = vector.extract_strided_slice %22 {offsets = [0, 0, 0], sizes = [10, 8, 128], strides = [1, 1, 1]} : vector<12x8x128xbf16> to vector<10x8x128xbf16>
    %24 = vector.extract_strided_slice %22 {offsets = [1, 0, 0], sizes = [10, 8, 128], strides = [1, 1, 1]} : vector<12x8x128xbf16> to vector<10x8x128xbf16>
    %25 = vector.extract_strided_slice %22 {offsets = [2, 0, 0], sizes = [10, 8, 128], strides = [1, 1, 1]} : vector<12x8x128xbf16> to vector<10x8x128xbf16>
    %26 = tpu.concatenate %23, %24, %25 in 2 : vector<10x8x128xbf16>, vector<10x8x128xbf16>, vector<10x8x128xbf16> -> vector<10x8x384xbf16>
    %27 = vector.shape_cast %26 : vector<10x8x384xbf16> to vector<80x384xbf16>
    %c0_10 = arith.constant 0 : index
    %c0_11 = arith.constant 0 : index
    %28 = vector.load %arg5[%c0_10, %c0_11] : memref<384x128xbf16, #tpu.memory_space<vmem>>, vector<384x128xbf16>
    %cst_12 = arith.constant dense<0.000000e+00> : vector<80x128xf32>
    %29 = tpu.matmul %27, %28, %cst_12 {dimension_numbers = #tpu.dot_dimension_numbers<[1], [0], [0], [1], [0, 0, 1, 1], [], []>} : vector<80x384xbf16>, vector<384x128xbf16>, vector<80x128xf32> -> vector<80x128xf32>
    %c0_13 = arith.constant 0 : index
    %c0_14 = arith.constant 0 : index
    %30 = vector.load %arg6[%c0_13, %c0_14] : memref<1x128xf32, #tpu.memory_space<vmem>>, vector<1x128xf32>
    %31 = vector.broadcast %30 : vector<1x128xf32> to vector<80x128xf32>
    %32 = arith.mulf %29, %31 : vector<80x128xf32>
    %c0_15 = arith.constant 0 : index
    %c0_16 = arith.constant 0 : index
    %33 = vector.load %arg7[%c0_15, %c0_16] : memref<1x128xf32, #tpu.memory_space<vmem>>, vector<1x128xf32>
    %34 = vector.broadcast %33 : vector<1x128xf32> to vector<80x128xf32>
    %35 = arith.addf %32, %34 : vector<80x128xf32>
    %cst_17 = arith.constant 0.000000e+00 : f32
    %36 = vector.broadcast %cst_17 : f32 to vector<80x128xf32>
    %37 = arith.cmpf ogt, %35, %36 : vector<80x128xf32>
    %cst_18 = arith.constant 0.00999999977 : f32
    %38 = vector.broadcast %cst_18 : f32 to vector<80x128xf32>
    %39 = arith.mulf %38, %35 : vector<80x128xf32>
    %40 = arith.select %37, %35, %39 : vector<80x128xi1>, vector<80x128xf32>
    %41 = vector.shape_cast %40 : vector<80x128xf32> to vector<10x8x128xf32>
    %42 = arith.truncf %41 : vector<10x8x128xf32> to vector<10x8x128xbf16>
    %43 = vector.extract_strided_slice %42 {offsets = [0, 0, 0], sizes = [8, 8, 128], strides = [1, 1, 1]} : vector<10x8x128xbf16> to vector<8x8x128xbf16>
    %44 = vector.extract_strided_slice %42 {offsets = [1, 0, 0], sizes = [8, 8, 128], strides = [1, 1, 1]} : vector<10x8x128xbf16> to vector<8x8x128xbf16>
    %45 = vector.extract_strided_slice %42 {offsets = [2, 0, 0], sizes = [8, 8, 128], strides = [1, 1, 1]} : vector<10x8x128xbf16> to vector<8x8x128xbf16>
    %46 = tpu.concatenate %43, %44, %45 in 2 : vector<8x8x128xbf16>, vector<8x8x128xbf16>, vector<8x8x128xbf16> -> vector<8x8x384xbf16>
    %47 = vector.shape_cast %46 : vector<8x8x384xbf16> to vector<64x384xbf16>
    %c0_19 = arith.constant 0 : index
    %c0_20 = arith.constant 0 : index
    %48 = vector.load %arg8[%c0_19, %c0_20] : memref<384x256xbf16, #tpu.memory_space<vmem>>, vector<384x256xbf16>
    %cst_21 = arith.constant dense<0.000000e+00> : vector<64x256xf32>
    %49 = tpu.matmul %47, %48, %cst_21 {dimension_numbers = #tpu.dot_dimension_numbers<[1], [0], [0], [1], [0, 0, 1, 1], [], []>} : vector<64x384xbf16>, vector<384x256xbf16>, vector<64x256xf32> -> vector<64x256xf32>
    %c0_22 = arith.constant 0 : index
    %c0_23 = arith.constant 0 : index
    %50 = vector.load %arg9[%c0_22, %c0_23] : memref<1x256xf32, #tpu.memory_space<vmem>>, vector<1x256xf32>
    %51 = vector.broadcast %50 : vector<1x256xf32> to vector<64x256xf32>
    %52 = arith.mulf %49, %51 : vector<64x256xf32>
    %c0_24 = arith.constant 0 : index
    %c0_25 = arith.constant 0 : index
    %53 = vector.load %arg10[%c0_24, %c0_25] : memref<1x256xf32, #tpu.memory_space<vmem>>, vector<1x256xf32>
    %54 = vector.broadcast %53 : vector<1x256xf32> to vector<64x256xf32>
    %55 = arith.addf %52, %54 : vector<64x256xf32>
    %cst_26 = arith.constant 0.000000e+00 : f32
    %56 = vector.broadcast %cst_26 : f32 to vector<64x256xf32>
    %57 = arith.cmpf ogt, %55, %56 : vector<64x256xf32>
    %cst_27 = arith.constant 0.00999999977 : f32
    %58 = vector.broadcast %cst_27 : f32 to vector<64x256xf32>
    %59 = arith.mulf %58, %55 : vector<64x256xf32>
    %60 = arith.select %57, %55, %59 : vector<64x256xi1>, vector<64x256xf32>
    %61 = vector.shape_cast %60 : vector<64x256xf32> to vector<8x8x256xf32>
    %62 = arith.truncf %61 : vector<8x8x256xf32> to vector<8x8x256xbf16>
    %c0_28 = arith.constant 0 : index
    %c0_29 = arith.constant 0 : index
    %c0_30 = arith.constant 0 : index
    %63 = vector.load %arg11[%c0_28, %c0_29, %c0_30] : memref<8x8x256xbf16, #tpu.memory_space<vmem>>, vector<8x8x256xbf16>
    tpu.vector_store %arg11[%c0_28, %c0_29, %c0_30], %62 {strides = array<i32>} : memref<8x8x256xbf16, #tpu.memory_space<vmem>>, vector<8x8x256xbf16>,
    return
  }
  func.func @transform_0(%arg0: i32) -> (i32, i32, i32) {
    %c0_i32 = arith.constant 0 : i32
    %c0_i32_0 = arith.constant 0 : i32
    %c0_i32_1 = arith.constant 0 : i32
    return %c0_i32, %arg0, %c0_i32_0 : i32, i32, i32
  }
  func.func @transform_1(%arg0: i32) -> (i32, i32) {
    %c0_i32 = arith.constant 0 : i32
    %c0_i32_0 = arith.constant 0 : i32
    %c0_i32_1 = arith.constant 0 : i32
    return %c0_i32, %c0_i32_0 : i32, i32
  }
  func.func @transform_2(%arg0: i32) -> (i32, i32) {
    %c0_i32 = arith.constant 0 : i32
    %c0_i32_0 = arith.constant 0 : i32
    %c0_i32_1 = arith.constant 0 : i32
    return %c0_i32, %c0_i32_0 : i32, i32
  }
  func.func @transform_3(%arg0: i32) -> (i32, i32) {
    %c0_i32 = arith.constant 0 : i32
    %c0_i32_0 = arith.constant 0 : i32
    %c0_i32_1 = arith.constant 0 : i32
    return %c0_i32, %c0_i32_0 : i32, i32
  }
  func.func @transform_4(%arg0: i32) -> (i32, i32) {
    %c0_i32 = arith.constant 0 : i32
    %c0_i32_0 = arith.constant 0 : i32
    %c0_i32_1 = arith.constant 0 : i32
    return %c0_i32, %c0_i32_0 : i32, i32
  }
  func.func @transform_5(%arg0: i32) -> (i32, i32) {
    %c0_i32 = arith.constant 0 : i32
    %c0_i32_0 = arith.constant 0 : i32
    %c0_i32_1 = arith.constant 0 : i32
    return %c0_i32, %c0_i32_0 : i32, i32
  }
  func.func @transform_6(%arg0: i32) -> (i32, i32) {
    %c0_i32 = arith.constant 0 : i32
    %c0_i32_0 = arith.constant 0 : i32
    %c0_i32_1 = arith.constant 0 : i32
    return %c0_i32, %c0_i32_0 : i32, i32
  }
  func.func @transform_7(%arg0: i32) -> (i32, i32) {
    %c0_i32 = arith.constant 0 : i32
    %c0_i32_0 = arith.constant 0 : i32
    %c0_i32_1 = arith.constant 0 : i32
    return %c0_i32, %c0_i32_0 : i32, i32
  }
  func.func @transform_8(%arg0: i32) -> (i32, i32) {
    %c0_i32 = arith.constant 0 : i32
    %c0_i32_0 = arith.constant 0 : i32
    %c0_i32_1 = arith.constant 0 : i32
    return %c0_i32, %c0_i32_0 : i32, i32
  }
  func.func @transform_9(%arg0: i32) -> (i32, i32) {
    %c0_i32 = arith.constant 0 : i32
    %c0_i32_0 = arith.constant 0 : i32
    %c0_i32_1 = arith.constant 0 : i32
    return %c0_i32, %c0_i32_0 : i32, i32
  }
  func.func @transform_10(%arg0: i32) -> (i32, i32, i32) {
    %c0_i32 = arith.constant 0 : i32
    %c0_i32_0 = arith.constant 0 : i32
    %c0_i32_1 = arith.constant 0 : i32
    return %c0_i32, %arg0, %c0_i32_0 : i32, i32, i32
  }
}

</mosaic_0001>

<llo_original>
// kernel: tpu_custom_call.1
$region0: #{tpu_custom_call.1}
  #allocation0 [shape = 'u32[]', space=smem, size = 0x4, offset = 0x4, fixed_abs, tag = 'smem constant byte address 0x4 - core index']
  #allocation1 [shape = 'u32[144,128]{1,0:T(1,128)}', space=vmem, size = 0x12000, scoped, tag = 'internal scratch']
  %s0 = inlined_call_operand.hbm [shape: bf16[16,8,128], index: 0, kind: input, shape index: {}]
  %s1 = inlined_call_operand.hbm [shape: bf16[640,128], index: 1, kind: input, shape index: {}]
  %s2 = inlined_call_operand.vmem [shape: f32[1,128], index: 2, kind: input, shape index: {}]
  %s3 = inlined_call_operand.hbm [shape: f32[1,128], index: 3, kind: input, shape index: {}]
  %s4 = inlined_call_operand.hbm [shape: bf16[384,128], index: 4, kind: input, shape index: {}]
  %s5 = inlined_call_operand.vmem [shape: f32[1,128], index: 5, kind: input, shape index: {}]
  %s6 = inlined_call_operand.vmem [shape: f32[1,128], index: 6, kind: input, shape index: {}]
  %s7 = inlined_call_operand.hbm [shape: bf16[384,256], index: 7, kind: input, shape index: {}]
  %s8 = inlined_call_operand.vmem [shape: f32[1,256], index: 8, kind: input, shape index: {}]
  %s9 = inlined_call_operand.vmem [shape: f32[1,256], index: 9, kind: input, shape index: {}]
  %s10 = inlined_call_operand.hbm [shape: bf16[8,8,256], index: 10, kind: output, shape index: {}]
  %s11 = sld [smem:[#allocation0]]
  $region70: #{tpu_custom_call.1} parent=0
    _
  %s13 = ssub.s32 1, %s11
  %s14 = scalar_select 0, %s13, %s11
  $region1: #{tpu_custom_call.1} parent=0
    #allocation2 [shape = 'u8[32768]{0}', space=vmem, size = 0x8000, scoped, tag = 'input window, operand 0, single buffered']
    #allocation3 [shape = 's32[1]{0}', space=sflag, size = 0x4, scoped, tag = 'scoped memory for tpu_custom_call.1']
    #allocation4 [shape = 's32[1]{0}', space=sflag, size = 0x4, scoped, tag = 'scoped memory for tpu_custom_call.1']
    #allocation5 [shape = 'u8[163840]{0}', space=vmem, size = 0x28000, scoped, tag = 'input window, operand 1, single buffered']
    #allocation6 [shape = 's32[1]{0}', space=sflag, size = 0x4, scoped, tag = 'scoped memory for tpu_custom_call.1']
    #allocation7 [shape = 'u8[512]{0}', space=vmem, size = 0x400, scoped, tag = 'input window, operand 3, single buffered']
    #allocation8 [shape = 'u8[98304]{0}', space=vmem, size = 0x18000, scoped, tag = 'input window, operand 4, single buffered']
    #allocation9 [shape = 's32[1]{0}', space=sflag, size = 0x4, scoped, tag = 'scoped memory for tpu_custom_call.1']
    #allocation10 [shape = 'u8[196608]{0}', space=vmem, size = 0x30000, scoped, tag = 'input window, operand 7, single buffered']
    #allocation11 [shape = 'u8[32768]{0}', space=vmem, size = 0x8000, scoped, tag = 'output window, operand 0, single buffered']
    %15 = vsyncpa [#allocation3], 0
    %16 = vsyncpa [#allocation6], 0
    %17 = vsyncpa [#allocation9], 0
    %18 = vsyncpa [#allocation4], 0
    // Predicated region
    $region2: #{tpu_custom_call.1} parent=1 // pred_check
      _
    $region3: #{tpu_custom_call.1} parent=1 // pred_check_branch
      %20 = sbr.rel (0) target = $region5
    $region4: #{tpu_custom_call.1} parent=1 // pred_region
      %s22 = ssub.s32 1024, 1024
      %23 = vsyncadd [#allocation3], %s22
      %s24 = sshll.u32 [#allocation2], 4
      %s25 = int_to_ptr.vmem [resolvable:$true] %s24
      %30 = dma.hbm_to_vmem [thread:$0]  %s0, 1024, %s25, [#allocation3], 64, 64, 4
    $region5: #{tpu_custom_call.1} parent=1 // pred_fallthru
      _
    // Predicated region
    $region6: #{tpu_custom_call.1} parent=1 // pred_check
      _
    $region7: #{tpu_custom_call.1} parent=1 // pred_check_branch
      %32 = sbr.rel (0) target = $region9
    $region8: #{tpu_custom_call.1} parent=1 // pred_region
      %s34 = ssub.s32 5120, 5120
      %35 = vsyncadd [#allocation6], %s34
      %s36 = sshll.u32 [#allocation5], 4
      %s37 = int_to_ptr.vmem [resolvable:$true] %s36
      %42 = dma.hbm_to_vmem [thread:$0]  %s1, 5120, %s37, [#allocation6], 64, 64, 4
    $region9: #{tpu_custom_call.1} parent=1 // pred_fallthru
      _
    // Predicated region
    $region10: #{tpu_custom_call.1} parent=1 // pred_check
      _
    $region11: #{tpu_custom_call.1} parent=1 // pred_check_branch
      %44 = sbr.rel (0) target = $region13
    $region12: #{tpu_custom_call.1} parent=1 // pred_region
      _
    $region13: #{tpu_custom_call.1} parent=1 // pred_fallthru
      _
    // Predicated region
    $region14: #{tpu_custom_call.1} parent=1 // pred_check
      _
    $region15: #{tpu_custom_call.1} parent=1 // pred_check_branch
      %46 = sbr.rel (0) target = $region17
    $region16: #{tpu_custom_call.1} parent=1 // pred_region
      %s48 = ssub.s32 16, 16
      %49 = vsyncadd [#allocation6], %s48
      %s51 = sshll.u32 [#allocation7], 4
      %s52 = int_to_ptr.vmem [resolvable:$true] %s51
      %54 = dma.hbm_to_vmem [thread:$0]  %s3, 16, %s52, [#allocation6]
    $region17: #{tpu_custom_call.1} parent=1 // pred_fallthru
      _
    // Predicated region
    $region18: #{tpu_custom_call.1} parent=1 // pred_check
      _
    $region19: #{tpu_custom_call.1} parent=1 // pred_check_branch
      %56 = sbr.rel (0) target = $region21
    $region20: #{tpu_custom_call.1} parent=1 // pred_region
      %s58 = ssub.s32 3072, 3072
      %59 = vsyncadd [#allocation9], %s58
      %s60 = sshll.u32 [#allocation8], 4
      %s61 = int_to_ptr.vmem [resolvable:$true] %s60
      %66 = dma.hbm_to_vmem [thread:$0]  %s4, 3072, %s61, [#allocation9], 64, 64, 4
    $region21: #{tpu_custom_call.1} parent=1 // pred_fallthru
      _
    // Predicated region
    $region22: #{tpu_custom_call.1} parent=1 // pred_check
      _
    $region23: #{tpu_custom_call.1} parent=1 // pred_check_branch
      %68 = sbr.rel (0) target = $region25
    $region24: #{tpu_custom_call.1} parent=1 // pred_region
      _
    $region25: #{tpu_custom_call.1} parent=1 // pred_fallthru
      _
    // Predicated region
    $region26: #{tpu_custom_call.1} parent=1 // pred_check
      _
    $region27: #{tpu_custom_call.1} parent=1 // pred_check_branch
      %70 = sbr.rel (0) target = $region29
    $region28: #{tpu_custom_call.1} parent=1 // pred_region
      _
    $region29: #{tpu_custom_call.1} parent=1 // pred_fallthru
      _
    // Predicated region
    $region30: #{tpu_custom_call.1} parent=1 // pred_check
      _
    $region31: #{tpu_custom_call.1} parent=1 // pred_check_branch
      %72 = sbr.rel (0) target = $region33
    $region32: #{tpu_custom_call.1} parent=1 // pred_region
      %s74 = ssub.s32 6144, 6144
      %75 = vsyncadd [#allocation9], %s74
      %s76 = sshll.u32 [#allocation10], 4
      %s77 = int_to_ptr.vmem [resolvable:$true] %s76
      %82 = dma.hbm_to_vmem [thread:$0]  %s7, 6144, %s77, [#allocation9], 128, 128, 8
    $region33: #{tpu_custom_call.1} parent=1 // pred_fallthru
      _
    // Predicated region
    $region34: #{tpu_custom_call.1} parent=1 // pred_check
      _
    $region35: #{tpu_custom_call.1} parent=1 // pred_check_branch
      %84 = sbr.rel (0) target = $region37
    $region36: #{tpu_custom_call.1} parent=1 // pred_region
      _
    $region37: #{tpu_custom_call.1} parent=1 // pred_fallthru
      _
    // Predicated region
    $region38: #{tpu_custom_call.1} parent=1 // pred_check
      _
    $region39: #{tpu_custom_call.1} parent=1 // pred_check_branch
      %86 = sbr.rel (0) target = $region41
    $region40: #{tpu_custom_call.1} parent=1 // pred_region
      _
    $region41: #{tpu_custom_call.1} parent=1 // pred_fallthru
      _
    // Predicated region
    $region42: #{tpu_custom_call.1} parent=1 // pred_check
      _
    $region43: #{tpu_custom_call.1} parent=1 // pred_check_branch
      %88 = sbr.rel (0) target = $region45
    $region44: #{tpu_custom_call.1} parent=1 // pred_region
      %89 = dma.done [#allocation3], 1024
    $region45: #{tpu_custom_call.1} parent=1 // pred_fallthru
      _
    // Predicated region
    $region46: #{tpu_custom_call.1} parent=1 // pred_check
      _
    $region47: #{tpu_custom_call.1} parent=1 // pred_check_branch
      %91 = sbr.rel (0) target = $region49
    $region48: #{tpu_custom_call.1} parent=1 // pred_region
      %92 = dma.done [#allocation6], 5120
    $region49: #{tpu_custom_call.1} parent=1 // pred_fallthru
      _
    // Predicated region
    $region50: #{tpu_custom_call.1} parent=1 // pred_check
      _
    $region51: #{tpu_custom_call.1} parent=1 // pred_check_branch
      %94 = sbr.rel (0) target = $region53
    $region52: #{tpu_custom_call.1} parent=1 // pred_region
      %95 = dma.done [#allocation6], 16
    $region53: #{tpu_custom_call.1} parent=1 // pred_fallthru
      _
    // Predicated region
    $region54: #{tpu_custom_call.1} parent=1 // pred_check
      _
    $region55: #{tpu_custom_call.1} parent=1 // pred_check_branch
      %97 = sbr.rel (0) target = $region57
    $region56: #{tpu_custom_call.1} parent=1 // pred_region
      %98 = dma.done [#allocation9], 3072
    $region57: #{tpu_custom_call.1} parent=1 // pred_fallthru
      _
    // Predicated region
    $region58: #{tpu_custom_call.1} parent=1 // pred_check
      _
    $region59: #{tpu_custom_call.1} parent=1 // pred_check_branch
      %100 = sbr.rel (0) target = $region61
    $region60: #{tpu_custom_call.1} parent=1 // pred_region
      %101 = dma.done [#allocation9], 6144
    $region61: #{tpu_custom_call.1} parent=1 // pred_fallthru
      _
    %v103 = vld [vmem:[#allocation2] sm:$0xf]
    %v104 = vld [vmem:[#allocation2 + $0x4] sm:$0xf]
    %v105 = vld [vmem:[#allocation2 + $0x8] sm:$0xf]
    %v106 = vld [vmem:[#allocation2 + $0xc] sm:$0xf]
    %v107 = vld [vmem:[#allocation2 + $0x10] sm:$0xf]
    %v108 = vld [vmem:[#allocation2 + $0x14] sm:$0xf]
    %v109 = vld [vmem:[#allocation2 + $0x18] sm:$0xf]
    %v110 = vld [vmem:[#allocation2 + $0x1c] sm:$0xf]
    %v111 = vld [vmem:[#allocation2 + $0x20] sm:$0xf]
    %v112 = vld [vmem:[#allocation2 + $0x24] sm:$0xf]
    %v113 = vld [vmem:[#allocation2 + $0x28] sm:$0xf]
    %v114 = vld [vmem:[#allocation2 + $0x2c] sm:$0xf]
    %v115 = vld [vmem:[#allocation2 + $0x30] sm:$0xf]
    %v116 = vld [vmem:[#allocation2 + $0x34] sm:$0xf]
    %v117 = vld [vmem:[#allocation2 + $0x38] sm:$0xf]
    %v118 = vld [vmem:[#allocation2 + $0x3c] sm:$0xf]
    %v135 = vunpack.c.l.b16 %v103
    %v136 = vunpack.c.l.b16 %v104
    %v137 = vunpack.c.l.b16 %v105
    %v138 = vunpack.c.l.b16 %v106
    %v139 = vunpack.c.l.b16 %v107
    %v140 = vunpack.c.l.b16 %v108
    %v141 = vunpack.c.l.b16 %v109
    %v142 = vunpack.c.l.b16 %v110
    %v143 = vunpack.c.l.b16 %v111
    %v144 = vunpack.c.l.b16 %v112
    %v145 = vunpack.c.l.b16 %v113
    %v146 = vunpack.c.l.b16 %v114
    %v147 = vunpack.c.l.b16 %v115
    %v148 = vunpack.c.l.b16 %v116
    %v149 = vunpack.c.l.b16 %v117
    %v150 = vunpack.c.l.b16 %v118
    %v151 = vld [vmem:[#allocation5] sm:$0xf]
    %v152 = vld [vmem:[#allocation5 + $0x4] sm:$0xf]
    %v153 = vld [vmem:[#allocation5 + $0x8] sm:$0xf]
    %v154 = vld [vmem:[#allocation5 + $0xc] sm:$0xf]
    %v155 = vld [vmem:[#allocation5 + $0x10] sm:$0xf]
    %v156 = vld [vmem:[#allocation5 + $0x14] sm:$0xf]
    %v157 = vld [vmem:[#allocation5 + $0x18] sm:$0xf]
    %v158 = vld [vmem:[#allocation5 + $0x1c] sm:$0xf]
    %v159 = vld [vmem:[#allocation5 + $0x20] sm:$0xf]
    %v160 = vld [vmem:[#allocation5 + $0x24] sm:$0xf]
    %v161 = vld [vmem:[#allocation5 + $0x28] sm:$0xf]
    %v162 = vld [vmem:[#allocation5 + $0x2c] sm:$0xf]
    %v163 = vld [vmem:[#allocation5 + $0x30] sm:$0xf]
    %v164 = vld [vmem:[#allocation5 + $0x34] sm:$0xf]
    %v165 = vld [vmem:[#allocation5 + $0x38] sm:$0xf]
    %v166 = vld [vmem:[#allocation5 + $0x3c] sm:$0xf]
    %v167 = vld [vmem:[#allocation5 + $0x40] sm:$0xf]
    %v168 = vld [vmem:[#allocation5 + $0x44] sm:$0xf]
    %v169 = vld [vmem:[#allocation5 + $0x48] sm:$0xf]
    %v170 = vld [vmem:[#allocation5 + $0x4c] sm:$0xf]
    %v171 = vld [vmem:[#allocation5 + $0x50] sm:$0xf]
    %v172 = vld [vmem:[#allocation5 + $0x54] sm:$0xf]
    %v173 = vld [vmem:[#allocation5 + $0x58] sm:$0xf]
    %v174 = vld [vmem:[#allocation5 + $0x5c] sm:$0xf]
    %v175 = vld [vmem:[#allocation5 + $0x60] sm:$0xf]
    %v176 = vld [vmem:[#allocation5 + $0x64] sm:$0xf]
    %v177 = vld [vmem:[#allocation5 + $0x68] sm:$0xf]
    %v178 = vld [vmem:[#allocation5 + $0x6c] sm:$0xf]
    %v179 = vld [vmem:[#allocation5 + $0x70] sm:$0xf]
    %v180 = vld [vmem:[#allocation5 + $0x74] sm:$0xf]
    %v181 = vld [vmem:[#allocation5 + $0x78] sm:$0xf]
    %v182 = vld [vmem:[#allocation5 + $0x7c] sm:$0xf]
    %v183 = vld [vmem:[#allocation5 + $0x80] sm:$0xf]
    %v184 = vld [vmem:[#allocation5 + $0x84] sm:$0xf]
    %v185 = vld [vmem:[#allocation5 + $0x88] sm:$0xf]
    %v186 = vld [vmem:[#allocation5 + $0x8c] sm:$0xf]
    %v187 = vld [vmem:[#allocation5 + $0x90] sm:$0xf]
    %v188 = vld [vmem:[#allocation5 + $0x94] sm:$0xf]
    %v189 = vld [vmem:[#allocation5 + $0x98] sm:$0xf]
    %v190 = vld [vmem:[#allocation5 + $0x9c] sm:$0xf]
    %v191 = vld [vmem:[#allocation5 + $0xa0] sm:$0xf]
    %v192 = vld [vmem:[#allocation5 + $0xa4] sm:$0xf]
    %v193 = vld [vmem:[#allocation5 + $0xa8] sm:$0xf]
    %v194 = vld [vmem:[#allocation5 + $0xac] sm:$0xf]
    %v195 = vld [vmem:[#allocation5 + $0xb0] sm:$0xf]
    %v196 = vld [vmem:[#allocation5 + $0xb4] sm:$0xf]
    %v197 = vld [vmem:[#allocation5 + $0xb8] sm:$0xf]
    %v198 = vld [vmem:[#allocation5 + $0xbc] sm:$0xf]
    %v199 = vld [vmem:[#allocation5 + $0xc0] sm:$0xf]
    %v200 = vld [vmem:[#allocation5 + $0xc4] sm:$0xf]
    %v201 = vld [vmem:[#allocation5 + $0xc8] sm:$0xf]
    %v202 = vld [vmem:[#allocation5 + $0xcc] sm:$0xf]
    %v203 = vld [vmem:[#allocation5 + $0xd0] sm:$0xf]
    %v204 = vld [vmem:[#allocation5 + $0xd4] sm:$0xf]
    %v205 = vld [vmem:[#allocation5 + $0xd8] sm:$0xf]
    %v206 = vld [vmem:[#allocation5 + $0xdc] sm:$0xf]
    %v207 = vld [vmem:[#allocation5 + $0xe0] sm:$0xf]
    %v208 = vld [vmem:[#allocation5 + $0xe4] sm:$0xf]
    %v209 = vld [vmem:[#allocation5 + $0xe8] sm:$0xf]
    %v210 = vld [vmem:[#allocation5 + $0xec] sm:$0xf]
    %v211 = vld [vmem:[#allocation5 + $0xf0] sm:$0xf]
    %v212 = vld [vmem:[#allocation5 + $0xf4] sm:$0xf]
    %v213 = vld [vmem:[#allocation5 + $0xf8] sm:$0xf]
    %v214 = vld [vmem:[#allocation5 + $0xfc] sm:$0xf]
    %v215 = vld [vmem:[#allocation5 + $0x100] sm:$0xf]
    %v216 = vld [vmem:[#allocation5 + $0x104] sm:$0xf]
    %v217 = vld [vmem:[#allocation5 + $0x108] sm:$0xf]
    %v218 = vld [vmem:[#allocation5 + $0x10c] sm:$0xf]
    %v219 = vld [vmem:[#allocation5 + $0x110] sm:$0xf]
    %v220 = vld [vmem:[#allocation5 + $0x114] sm:$0xf]
    %v221 = vld [vmem:[#allocation5 + $0x118] sm:$0xf]
    %v222 = vld [vmem:[#allocation5 + $0x11c] sm:$0xf]
    %v223 = vld [vmem:[#allocation5 + $0x120] sm:$0xf]
    %v224 = vld [vmem:[#allocation5 + $0x124] sm:$0xf]
    %v225 = vld [vmem:[#allocation5 + $0x128] sm:$0xf]
    %v226 = vld [vmem:[#allocation5 + $0x12c] sm:$0xf]
    %v227 = vld [vmem:[#allocation5 + $0x130] sm:$0xf]
    %v228 = vld [vmem:[#allocation5 + $0x134] sm:$0xf]
    %v229 = vld [vmem:[#allocation5 + $0x138] sm:$0xf]
    %v230 = vld [vmem:[#allocation5 + $0x13c] sm:$0xf]
    %v231 = vpack.c.b16 %v136, %v135
    %v232 = vpack.c.b16 %v137, %v136
    %v233 = vpack.c.b16 %v138, %v137
    %v234 = vpack.c.b16 %v139, %v138
    %v235 = vpack.c.b16 %v140, %v139
    %v236 = vpack.c.b16 %v141, %v140
    %v237 = vpack.c.b16 %v142, %v141
    %v238 = vpack.c.b16 %v143, %v142
    %v239 = vpack.c.b16 %v144, %v143
    %v240 = vpack.c.b16 %v145, %v144
    %v241 = vpack.c.b16 %v146, %v145
    %v242 = vpack.c.b16 %v147, %v146
    %v243 = vpack.c.b16 %v148, %v147
    %v244 = vpack.c.b16 %v149, %v148
    %v245 = vpack.c.b16 %v150, %v149
    %v341 = vunpack.c.l.b16 %v151
    %v342 = vunpack.c.l.b16 %v152
    %v343 = vunpack.c.l.b16 %v153
    %v344 = vunpack.c.l.b16 %v154
    %v345 = vunpack.c.l.b16 %v155
    %v346 = vunpack.c.l.b16 %v156
    %v347 = vunpack.c.l.b16 %v157
    %v348 = vunpack.c.l.b16 %v158
    %v349 = vunpack.c.l.b16 %v159
    %v350 = vunpack.c.l.b16 %v160
    %v351 = vunpack.c.l.b16 %v161
    %v352 = vunpack.c.l.b16 %v162
    %v353 = vunpack.c.l.b16 %v163
    %v354 = vunpack.c.l.b16 %v164
    %v355 = vunpack.c.l.b16 %v165
    %v356 = vunpack.c.l.b16 %v166
    %v357 = vunpack.c.l.b16 %v167
    %v358 = vunpack.c.l.b16 %v168
    %v359 = vunpack.c.l.b16 %v169
    %v360 = vunpack.c.l.b16 %v170
    %v361 = vunpack.c.l.b16 %v171
    %v362 = vunpack.c.l.b16 %v172
    %v363 = vunpack.c.l.b16 %v173
    %v364 = vunpack.c.l.b16 %v174
    %v365 = vunpack.c.l.b16 %v175
    %v366 = vunpack.c.l.b16 %v176
    %v367 = vunpack.c.l.b16 %v177
    %v368 = vunpack.c.l.b16 %v178
    %v369 = vunpack.c.l.b16 %v179
    %v370 = vunpack.c.l.b16 %v180
    %v371 = vunpack.c.l.b16 %v181
    %v372 = vunpack.c.l.b16 %v182
    %v373 = vunpack.c.l.b16 %v183
    %v374 = vunpack.c.l.b16 %v184
    %v375 = vunpack.c.l.b16 %v185
    %v376 = vunpack.c.l.b16 %v186
    %v377 = vunpack.c.l.b16 %v187
    %v378 = vunpack.c.l.b16 %v188
    %v379 = vunpack.c.l.b16 %v189
    %v380 = vunpack.c.l.b16 %v190
    %v381 = vunpack.c.l.b16 %v191
    %v382 = vunpack.c.l.b16 %v192
    %v383 = vunpack.c.l.b16 %v193
    %v384 = vunpack.c.l.b16 %v194
    %v385 = vunpack.c.l.b16 %v195
    %v386 = vunpack.c.l.b16 %v196
    %v387 = vunpack.c.l.b16 %v197
    %v388 = vunpack.c.l.b16 %v198
    %v389 = vunpack.c.l.b16 %v199
    %v390 = vunpack.c.l.b16 %v200
    %v391 = vunpack.c.l.b16 %v201
    %v392 = vunpack.c.l.b16 %v202
    %v393 = vunpack.c.l.b16 %v203
    %v394 = vunpack.c.l.b16 %v204
    %v395 = vunpack.c.l.b16 %v205
    %v396 = vunpack.c.l.b16 %v206
    %v397 = vunpack.c.l.b16 %v207
    %v398 = vunpack.c.l.b16 %v208
    %v399 = vunpack.c.l.b16 %v209
    %v400 = vunpack.c.l.b16 %v210
    %v401 = vunpack.c.l.b16 %v211
    %v402 = vunpack.c.l.b16 %v212
    %v403 = vunpack.c.l.b16 %v213
    %v404 = vunpack.c.l.b16 %v214
    %v405 = vunpack.c.l.b16 %v215
    %v406 = vunpack.c.l.b16 %v216
    %v407 = vunpack.c.l.b16 %v217
    %v408 = vunpack.c.l.b16 %v218
    %v409 = vunpack.c.l.b16 %v219
    %v410 = vunpack.c.l.b16 %v220
    %v411 = vunpack.c.l.b16 %v221
    %v412 = vunpack.c.l.b16 %v222
    %v413 = vunpack.c.l.b16 %v223
    %v414 = vunpack.c.l.b16 %v224
    %v415 = vunpack.c.l.b16 %v225
    %v416 = vunpack.c.l.b16 %v226
    %v417 = vunpack.c.l.b16 %v227
    %v418 = vunpack.c.l.b16 %v228
    %v419 = vunpack.c.l.b16 %v229
    %v420 = vunpack.c.l.b16 %v230
    %v421 = vpack.c.b16 %v342, %v341
    %v422 = vpack.c.b16 %v344, %v343
    %v423 = vpack.c.b16 %v346, %v345
    %v424 = vpack.c.b16 %v348, %v347
    %v425 = vpack.c.b16 %v350, %v349
    %v426 = vpack.c.b16 %v352, %v351
    %v427 = vpack.c.b16 %v354, %v353
    %v428 = vpack.c.b16 %v356, %v355
    %v429 = vpack.c.b16 %v358, %v357
    %v430 = vpack.c.b16 %v360, %v359
    %v431 = vpack.c.b16 %v362, %v361
    %v432 = vpack.c.b16 %v364, %v363
    %v433 = vpack.c.b16 %v366, %v365
    %v434 = vpack.c.b16 %v368, %v367
    %v435 = vpack.c.b16 %v370, %v369
    %v436 = vpack.c.b16 %v372, %v371
    %v437 = vpack.c.b16 %v374, %v373
    %v438 = vpack.c.b16 %v376, %v375
    %v439 = vpack.c.b16 %v378, %v377
    %v440 = vpack.c.b16 %v380, %v379
    %v441 = vpack.c.b16 %v382, %v381
    %v442 = vpack.c.b16 %v384, %v383
    %v443 = vpack.c.b16 %v386, %v385
    %v444 = vpack.c.b16 %v388, %v387
    %v445 = vpack.c.b16 %v390, %v389
    %v446 = vpack.c.b16 %v392, %v391
    %v447 = vpack.c.b16 %v394, %v393
    %v448 = vpack.c.b16 %v396, %v395
    %v449 = vpack.c.b16 %v398, %v397
    %v450 = vpack.c.b16 %v400, %v399
    %v451 = vpack.c.b16 %v402, %v401
    %v452 = vpack.c.b16 %v404, %v403
    %v453 = vpack.c.b16 %v406, %v405
    %v454 = vpack.c.b16 %v408, %v407
    %v455 = vpack.c.b16 %v410, %v409
    %v456 = vpack.c.b16 %v412, %v411
    %v457 = vpack.c.b16 %v414, %v413
    %v458 = vpack.c.b16 %v416, %v415
    %v459 = vpack.c.b16 %v418, %v417
    %v460 = vpack.c.b16 %v420, %v419
    %501 = vmatprep.subr.bf16.mxu0 0
    %502 = vmatpush1.bf16.msra.mxu0 %v428
    %503 = vmatprep.subr.bf16.mxu0 0
    %504 = vmatpush1.bf16.msra.mxu0 %v427
    %505 = vmatprep.subr.bf16.mxu0 0
    %506 = vmatpush1.bf16.msra.mxu0 %v426
    %507 = vmatprep.subr.bf16.mxu0 0
    %508 = vmatpush1.bf16.msra.mxu0 %v425
    %509 = vmatprep.subr.bf16.mxu0 0
    %510 = vmatpush1.bf16.msra.mxu0 %v424
    %511 = vmatprep.subr.bf16.mxu0 0
    %512 = vmatpush1.bf16.msra.mxu0 %v423
    %513 = vmatprep.subr.bf16.mxu0 0
    %514 = vmatpush1.bf16.msra.mxu0 %v422
    %515 = vmatprep.subr.bf16.mxu0 0
    %516 = vmatpush1.bf16.msra.mxu0 %v421
    %517 = vmatprep.subr.bf16.mxu0 0
    %518 = vmatpush2.bf16.msra.mxu0 %v436
    %519 = vmatprep.subr.bf16.mxu0 0
    %520 = vmatpush2.bf16.msra.mxu0 %v435
    %521 = vmatprep.subr.bf16.mxu0 0
    %522 = vmatpush2.bf16.msra.mxu0 %v434
    %523 = vmatprep.subr.bf16.mxu0 0
    %524 = vmatpush2.bf16.msra.mxu0 %v433
    %525 = vmatprep.subr.bf16.mxu0 0
    %526 = vmatpush2.bf16.msra.mxu0 %v432
    %527 = vmatprep.subr.bf16.mxu0 0
    %528 = vmatpush2.bf16.msra.mxu0 %v431
    %529 = vmatprep.subr.bf16.mxu0 0
    %530 = vmatpush2.bf16.msra.mxu0 %v430
    %531 = vmatprep.subr.bf16.mxu0 0
    %532 = vmatpush2.bf16.msra.mxu0 %v429
    %533 = vmatprep.mubr.bf16.mxu0 %v232
    %534 = vmatmul.mubr.bf16.gmra.mxu0 %v231
    %v535 = vpop.f32.mrf.mxu0
    %v536 = vadd.f32 0.0, %v535
    %v537 = vpop.f32.mrf.mxu0
    %v538 = vpop.f32.mrf.mxu0
    %v539 = vadd.f32 0.0, %v538
    %v540 = vpop.f32.mrf.mxu0
    %541 = vmatprep.mubr.bf16.mxu0 %v234
    %542 = vmatmul.mubr.bf16.gmra.mxu0 %v233
    %v543 = vpop.f32.mrf.mxu0
    %v544 = vadd.f32 0.0, %v543
    %v545 = vpop.f32.mrf.mxu0
    %v546 = vpop.f32.mrf.mxu0
    %v547 = vadd.f32 0.0, %v546
    %v548 = vpop.f32.mrf.mxu0
    %549 = vmatprep.mubr.bf16.mxu0 %v236
    %550 = vmatmul.mubr.bf16.gmra.mxu0 %v235
    %v551 = vpop.f32.mrf.mxu0
    %v552 = vadd.f32 0.0, %v551
    %v553 = vpop.f32.mrf.mxu0
    %v554 = vpop.f32.mrf.mxu0
    %v555 = vadd.f32 0.0, %v554
    %v556 = vpop.f32.mrf.mxu0
    %557 = vmatprep.mubr.bf16.mxu0 %v238
    %558 = vmatmul.mubr.bf16.gmra.mxu0 %v237
    %v559 = vpop.f32.mrf.mxu0
    %v560 = vadd.f32 0.0, %v559
    %v561 = vpop.f32.mrf.mxu0
    %v562 = vpop.f32.mrf.mxu0
    %v563 = vadd.f32 0.0, %v562
    %v564 = vpop.f32.mrf.mxu0
    %565 = vmatprep.mubr.bf16.mxu0 %v240
    %566 = vmatmul.mubr.bf16.gmra.mxu0 %v239
    %v567 = vpop.f32.mrf.mxu0
    %v568 = vadd.f32 0.0, %v567
    %v569 = vpop.f32.mrf.mxu0
    %v570 = vpop.f32.mrf.mxu0
    %v571 = vadd.f32 0.0, %v570
    %v572 = vpop.f32.mrf.mxu0
    %573 = vmatprep.mubr.bf16.mxu0 %v242
    %574 = vmatmul.mubr.bf16.gmra.mxu0 %v241
    %v575 = vpop.f32.mrf.mxu0
    %v576 = vadd.f32 0.0, %v575
    %v577 = vpop.f32.mrf.mxu0
    %v578 = vpop.f32.mrf.mxu0
    %v579 = vadd.f32 0.0, %v578
    %v580 = vpop.f32.mrf.mxu0
    %581 = vdwg.mxu0
    %582 = vmatprep.subr.bf16.mxu0 0
    %583 = vmatpush1.bf16.msra.mxu0 %v444
    %584 = vmatprep.subr.bf16.mxu0 0
    %585 = vmatpush1.bf16.msra.mxu0 %v443
    %586 = vmatprep.subr.bf16.mxu0 0
    %587 = vmatpush1.bf16.msra.mxu0 %v442
    %588 = vmatprep.subr.bf16.mxu0 0
    %589 = vmatpush1.bf16.msra.mxu0 %v441
    %590 = vmatprep.subr.bf16.mxu0 0
    %591 = vmatpush1.bf16.msra.mxu0 %v440
    %592 = vmatprep.subr.bf16.mxu0 0
    %593 = vmatpush1.bf16.msra.mxu0 %v439
    %594 = vmatprep.subr.bf16.mxu0 0
    %595 = vmatpush1.bf16.msra.mxu0 %v438
    %596 = vmatprep.subr.bf16.mxu0 0
    %597 = vmatpush1.bf16.msra.mxu0 %v437
    %598 = vmatprep.subr.bf16.mxu0 0
    %599 = vmatpush2.bf16.msra.mxu0 %v452
    %600 = vmatprep.subr.bf16.mxu0 0
    %601 = vmatpush2.bf16.msra.mxu0 %v451
    %602 = vmatprep.subr.bf16.mxu0 0
    %603 = vmatpush2.bf16.msra.mxu0 %v450
    %604 = vmatprep.subr.bf16.mxu0 0
    %605 = vmatpush2.bf16.msra.mxu0 %v449
    %606 = vmatprep.subr.bf16.mxu0 0
    %607 = vmatpush2.bf16.msra.mxu0 %v448
    %608 = vmatprep.subr.bf16.mxu0 0
    %609 = vmatpush2.bf16.msra.mxu0 %v447
    %610 = vmatprep.subr.bf16.mxu0 0
    %611 = vmatpush2.bf16.msra.mxu0 %v446
    %612 = vmatprep.subr.bf16.mxu0 0
    %613 = vmatpush2.bf16.msra.mxu0 %v445
    %614 = vmatprep.mubr.bf16.mxu0 %v234
    %615 = vmatmul.mubr.bf16.gmra.mxu0 %v233
    %v616 = vpop.f32.mrf.mxu0
    %v617 = vadd.f32 %v536, %v616
    %v618 = vpop.f32.mrf.mxu0
    %v619 = vpop.f32.mrf.mxu0
    %v620 = vadd.f32 %v539, %v619
    %v621 = vpop.f32.mrf.mxu0
    %622 = vmatprep.mubr.bf16.mxu0 %v236
    %623 = vmatmul.mubr.bf16.gmra.mxu0 %v235
    %v624 = vpop.f32.mrf.mxu0
    %v625 = vadd.f32 %v544, %v624
    %v626 = vpop.f32.mrf.mxu0
    %v627 = vpop.f32.mrf.mxu0
    %v628 = vadd.f32 %v547, %v627
    %v629 = vpop.f32.mrf.mxu0
    %630 = vmatprep.mubr.bf16.mxu0 %v238
    %631 = vmatmul.mubr.bf16.gmra.mxu0 %v237
    %v632 = vpop.f32.mrf.mxu0
    %v633 = vadd.f32 %v552, %v632
    %v634 = vpop.f32.mrf.mxu0
    %v635 = vpop.f32.mrf.mxu0
    %v636 = vadd.f32 %v555, %v635
    %v637 = vpop.f32.mrf.mxu0
    %638 = vmatprep.mubr.bf16.mxu0 %v240
    %639 = vmatmul.mubr.bf16.gmra.mxu0 %v239
    %v640 = vpop.f32.mrf.mxu0
    %v641 = vadd.f32 %v560, %v640
    %v642 = vpop.f32.mrf.mxu0
    %v643 = vpop.f32.mrf.mxu0
    %v644 = vadd.f32 %v563, %v643
    %v645 = vpop.f32.mrf.mxu0
    %646 = vmatprep.mubr.bf16.mxu0 %v242
    %647 = vmatmul.mubr.bf16.gmra.mxu0 %v241
    %v648 = vpop.f32.mrf.mxu0
    %v649 = vadd.f32 %v568, %v648
    %v650 = vpop.f32.mrf.mxu0
    %v651 = vpop.f32.mrf.mxu0
    %v652 = vadd.f32 %v571, %v651
    %v653 = vpop.f32.mrf.mxu0
    %654 = vmatprep.mubr.bf16.mxu0 %v244
    %655 = vmatmul.mubr.bf16.gmra.mxu0 %v243
    %v656 = vpop.f32.mrf.mxu0
    %v657 = vadd.f32 %v576, %v656
    %v658 = vpop.f32.mrf.mxu0
    %v659 = vpop.f32.mrf.mxu0
    %v660 = vadd.f32 %v579, %v659
    %v661 = vpop.f32.mrf.mxu0
    %662 = vdwg.mxu0
    %663 = vmatprep.subr.bf16.mxu0 0
    %664 = vmatpush1.bf16.msra.mxu0 %v460
    %665 = vmatprep.subr.bf16.mxu0 0
    %666 = vmatpush1.bf16.msra.mxu0 %v459
    %667 = vmatprep.subr.bf16.mxu0 0
    %668 = vmatpush1.bf16.msra.mxu0 %v458
    %669 = vmatprep.subr.bf16.mxu0 0
    %670 = vmatpush1.bf16.msra.mxu0 %v457
    %671 = vmatprep.subr.bf16.mxu0 0
    %672 = vmatpush1.bf16.msra.mxu0 %v456
    %673 = vmatprep.subr.bf16.mxu0 0
    %674 = vmatpush1.bf16.msra.mxu0 %v455
    %675 = vmatprep.subr.bf16.mxu0 0
    %676 = vmatpush1.bf16.msra.mxu0 %v454
    %677 = vmatprep.subr.bf16.mxu0 0
    %678 = vmatpush1.bf16.msra.mxu0 %v453
    %679 = vmatprep.subr.bf16.mxu0 0
    %680 = vmatpush2.bf16.msra.mxu0 0
    %681 = vmatprep.subr.bf16.mxu0 0
    %682 = vmatpush2.bf16.msra.mxu0 0
    %683 = vmatprep.subr.bf16.mxu0 0
    %684 = vmatpush2.bf16.msra.mxu0 0
    %685 = vmatprep.subr.bf16.mxu0 0
    %686 = vmatpush2.bf16.msra.mxu0 0
    %687 = vmatprep.subr.bf16.mxu0 0
    %688 = vmatpush2.bf16.msra.mxu0 0
    %689 = vmatprep.subr.bf16.mxu0 0
    %690 = vmatpush2.bf16.msra.mxu0 0
    %691 = vmatprep.subr.bf16.mxu0 0
    %692 = vmatpush2.bf16.msra.mxu0 0
    %693 = vmatprep.subr.bf16.mxu0 0
    %694 = vmatpush2.bf16.msra.mxu0 0
    %695 = vmatprep.mubr.bf16.mxu0 0
    %696 = vmatmul.mubr.bf16.gmra.mxu0 %v235
    %v697 = vpop.f32.mrf.mxu0
    %v698 = vadd.f32 %v617, %v697
    %v699 = vpop.f32.mrf.mxu0
    %v700 = vpop.f32.mrf.mxu0
    %v701 = vadd.f32 %v620, %v700
    %v702 = vpop.f32.mrf.mxu0
    %703 = vmatprep.mubr.bf16.mxu0 0
    %704 = vmatmul.mubr.bf16.gmra.mxu0 %v237
    %v705 = vpop.f32.mrf.mxu0
    %v706 = vadd.f32 %v625, %v705
    %v707 = vpop.f32.mrf.mxu0
    %v708 = vpop.f32.mrf.mxu0
    %v709 = vadd.f32 %v628, %v708
    %v710 = vpop.f32.mrf.mxu0
    %711 = vmatprep.mubr.bf16.mxu0 0
    %712 = vmatmul.mubr.bf16.gmra.mxu0 %v239
    %v713 = vpop.f32.mrf.mxu0
    %v714 = vadd.f32 %v633, %v713
    %v715 = vpop.f32.mrf.mxu0
    %v716 = vpop.f32.mrf.mxu0
    %v717 = vadd.f32 %v636, %v716
    %v718 = vpop.f32.mrf.mxu0
    %719 = vmatprep.mubr.bf16.mxu0 0
    %720 = vmatmul.mubr.bf16.gmra.mxu0 %v241
    %v721 = vpop.f32.mrf.mxu0
    %v722 = vadd.f32 %v641, %v721
    %v723 = vpop.f32.mrf.mxu0
    %v724 = vpop.f32.mrf.mxu0
    %v725 = vadd.f32 %v644, %v724
    %v726 = vpop.f32.mrf.mxu0
    %727 = vmatprep.mubr.bf16.mxu0 0
    %728 = vmatmul.mubr.bf16.gmra.mxu0 %v243
    %v729 = vpop.f32.mrf.mxu0
    %v730 = vadd.f32 %v649, %v729
    %v731 = vpop.f32.mrf.mxu0
    %v732 = vpop.f32.mrf.mxu0
    %v733 = vadd.f32 %v652, %v732
    %v734 = vpop.f32.mrf.mxu0
    %735 = vmatprep.mubr.bf16.mxu0 0
    %736 = vmatmul.mubr.bf16.gmra.mxu0 %v245
    %v737 = vpop.f32.mrf.mxu0
    %v738 = vadd.f32 %v657, %v737
    %v739 = vpop.f32.mrf.mxu0
    %v740 = vpop.f32.mrf.mxu0
    %v741 = vadd.f32 %v660, %v740
    %v742 = vpop.f32.mrf.mxu0
    %743 = vdwg.mxu0
    %v744 = vld [vmem:[%s2] sm:$0x1]
    %v746 = vlaneseq
    %v747 = vshrl.u32 %v746, 7
    %v748 = vsub.s32 0, %v747
    %v749 = vrot.slane %v744, %v748
    %v751 = vmul.f32 %v698, %v749
    %v752 = vmul.f32 %v701, %v749
    %v753 = vmul.f32 %v706, %v749
    %v754 = vmul.f32 %v709, %v749
    %v755 = vmul.f32 %v714, %v749
    %v756 = vmul.f32 %v717, %v749
    %v757 = vmul.f32 %v722, %v749
    %v758 = vmul.f32 %v725, %v749
    %v759 = vmul.f32 %v730, %v749
    %v760 = vmul.f32 %v733, %v749
    %v761 = vmul.f32 %v738, %v749
    %v762 = vmul.f32 %v741, %v749
    %v763 = vld [vmem:[#allocation7] sm:$0x1]
    %v765 = vlaneseq
    %v766 = vshrl.u32 %v765, 7
    %v767 = vsub.s32 0, %v766
    %v768 = vrot.slane %v763, %v767
    %v770 = vadd.f32 %v751, %v768
    %v771 = vadd.f32 %v752, %v768
    %v772 = vadd.f32 %v753, %v768
    %v773 = vadd.f32 %v754, %v768
    %v774 = vadd.f32 %v755, %v768
    %v775 = vadd.f32 %v756, %v768
    %v776 = vadd.f32 %v757, %v768
    %v777 = vadd.f32 %v758, %v768
    %v778 = vadd.f32 %v759, %v768
    %v779 = vadd.f32 %v760, %v768
    %v780 = vadd.f32 %v761, %v768
    %v781 = vadd.f32 %v762, %v768
    %vm782 = vcmp.gt.f32.partialorder %v770, 0.0
    %vm783 = vcmp.gt.f32.partialorder %v771, 0.0
    %vm784 = vcmp.gt.f32.partialorder %v772, 0.0
    %vm785 = vcmp.gt.f32.partialorder %v773, 0.0
    %vm786 = vcmp.gt.f32.partialorder %v774, 0.0
    %vm787 = vcmp.gt.f32.partialorder %v775, 0.0
    %vm788 = vcmp.gt.f32.partialorder %v776, 0.0
    %vm789 = vcmp.gt.f32.partialorder %v777, 0.0
    %vm790 = vcmp.gt.f32.partialorder %v778, 0.0
    %vm791 = vcmp.gt.f32.partialorder %v779, 0.0
    %vm792 = vcmp.gt.f32.partialorder %v780, 0.0
    %vm793 = vcmp.gt.f32.partialorder %v781, 0.0
    %v794 = vmul.f32 %v770, 0.01
    %v795 = vmul.f32 %v771, 0.01
    %v796 = vmul.f32 %v772, 0.01
    %v797 = vmul.f32 %v773, 0.01
    %v798 = vmul.f32 %v774, 0.01
    %v799 = vmul.f32 %v775, 0.01
    %v800 = vmul.f32 %v776, 0.01
    %v801 = vmul.f32 %v777, 0.01
    %v802 = vmul.f32 %v778, 0.01
    %v803 = vmul.f32 %v779, 0.01
    %v804 = vmul.f32 %v780, 0.01
    %v805 = vmul.f32 %v781, 0.01
    %v806 = vsel %vm782, %v770, %v794
    %v807 = vsel %vm783, %v771, %v795
    %v808 = vsel %vm784, %v772, %v796
    %v809 = vsel %vm785, %v773, %v797
    %v810 = vsel %vm786, %v774, %v798
    %v811 = vsel %vm787, %v775, %v799
    %v812 = vsel %vm788, %v776, %v800
    %v813 = vsel %vm789, %v777, %v801
    %v814 = vsel %vm790, %v778, %v802
    %v815 = vsel %vm791, %v779, %v803
    %v816 = vsel %vm792, %v780, %v804
    %v817 = vsel %vm793, %v781, %v805
    %v818 = vpack.c.bf16 %v806, %v806
    %v819 = vpack.c.bf16 %v807, %v807
    %v820 = vpack.c.bf16 %v808, %v808
    %v821 = vpack.c.bf16 %v809, %v809
    %v822 = vpack.c.bf16 %v810, %v810
    %v823 = vpack.c.bf16 %v811, %v811
    %v824 = vpack.c.bf16 %v812, %v812
    %v825 = vpack.c.bf16 %v813, %v813
    %v826 = vpack.c.bf16 %v814, %v814
    %v827 = vpack.c.bf16 %v815, %v815
    %v828 = vpack.c.bf16 %v816, %v816
    %v829 = vpack.c.bf16 %v817, %v817
    %v842 = vunpack.c.l.b16 %v818
    %v843 = vunpack.c.l.b16 %v819
    %v844 = vunpack.c.l.b16 %v820
    %v845 = vunpack.c.l.b16 %v821
    %v846 = vunpack.c.l.b16 %v822
    %v847 = vunpack.c.l.b16 %v823
    %v848 = vunpack.c.l.b16 %v824
    %v849 = vunpack.c.l.b16 %v825
    %v850 = vunpack.c.l.b16 %v826
    %v851 = vunpack.c.l.b16 %v827
    %v852 = vunpack.c.l.b16 %v828
    %v853 = vunpack.c.l.b16 %v829
    %v854 = vld [vmem:[#allocation8] sm:$0xf]
    %v855 = vld [vmem:[#allocation8 + $0x4] sm:$0xf]
    %v856 = vld [vmem:[#allocation8 + $0x8] sm:$0xf]
    %v857 = vld [vmem:[#allocation8 + $0xc] sm:$0xf]
    %v858 = vld [vmem:[#allocation8 + $0x10] sm:$0xf]
    %v859 = vld [vmem:[#allocation8 + $0x14] sm:$0xf]
    %v860 = vld [vmem:[#allocation8 + $0x18] sm:$0xf]
    %v861 = vld [vmem:[#allocation8 + $0x1c] sm:$0xf]
    %v862 = vld [vmem:[#allocation8 + $0x20] sm:$0xf]
    %v863 = vld [vmem:[#allocation8 + $0x24] sm:$0xf]
    %v864 = vld [vmem:[#allocation8 + $0x28] sm:$0xf]
    %v865 = vld [vmem:[#allocation8 + $0x2c] sm:$0xf]
    %v866 = vld [vmem:[#allocation8 + $0x30] sm:$0xf]
    %v867 = vld [vmem:[#allocation8 + $0x34] sm:$0xf]
    %v868 = vld [vmem:[#allocation8 + $0x38] sm:$0xf]
    %v869 = vld [vmem:[#allocation8 + $0x3c] sm:$0xf]
    %v870 = vld [vmem:[#allocation8 + $0x40] sm:$0xf]
    %v871 = vld [vmem:[#allocation8 + $0x44] sm:$0xf]
    %v872 = vld [vmem:[#allocation8 + $0x48] sm:$0xf]
    %v873 = vld [vmem:[#allocation8 + $0x4c] sm:$0xf]
    %v874 = vld [vmem:[#allocation8 + $0x50] sm:$0xf]
    %v875 = vld [vmem:[#allocation8 + $0x54] sm:$0xf]
    %v876 = vld [vmem:[#allocation8 + $0x58] sm:$0xf]
    %v877 = vld [vmem:[#allocation8 + $0x5c] sm:$0xf]
    %v878 = vld [vmem:[#allocation8 + $0x60] sm:$0xf]
    %v879 = vld [vmem:[#allocation8 + $0x64] sm:$0xf]
    %v880 = vld [vmem:[#allocation8 + $0x68] sm:$0xf]
    %v881 = vld [vmem:[#allocation8 + $0x6c] sm:$0xf]
    %v882 = vld [vmem:[#allocation8 + $0x70] sm:$0xf]
    %v883 = vld [vmem:[#allocation8 + $0x74] sm:$0xf]
    %v884 = vld [vmem:[#allocation8 + $0x78] sm:$0xf]
    %v885 = vld [vmem:[#allocation8 + $0x7c] sm:$0xf]
    %v886 = vld [vmem:[#allocation8 + $0x80] sm:$0xf]
    %v887 = vld [vmem:[#allocation8 + $0x84] sm:$0xf]
    %v888 = vld [vmem:[#allocation8 + $0x88] sm:$0xf]
    %v889 = vld [vmem:[#allocation8 + $0x8c] sm:$0xf]
    %v890 = vld [vmem:[#allocation8 + $0x90] sm:$0xf]
    %v891 = vld [vmem:[#allocation8 + $0x94] sm:$0xf]
    %v892 = vld [vmem:[#allocation8 + $0x98] sm:$0xf]
    %v893 = vld [vmem:[#allocation8 + $0x9c] sm:$0xf]
    %v894 = vld [vmem:[#allocation8 + $0xa0] sm:$0xf]
    %v895 = vld [vmem:[#allocation8 + $0xa4] sm:$0xf]
    %v896 = vld [vmem:[#allocation8 + $0xa8] sm:$0xf]
    %v897 = vld [vmem:[#allocation8 + $0xac] sm:$0xf]
    %v898 = vld [vmem:[#allocation8 + $0xb0] sm:$0xf]
    %v899 = vld [vmem:[#allocation8 + $0xb4] sm:$0xf]
    %v900 = vld [vmem:[#allocation8 + $0xb8] sm:$0xf]
    %v901 = vld [vmem:[#allocation8 + $0xbc] sm:$0xf]
    %v902 = vpack.c.b16 %v843, %v842
    %v903 = vpack.c.b16 %v844, %v843
    %v904 = vpack.c.b16 %v845, %v844
    %v905 = vpack.c.b16 %v846, %v845
    %v906 = vpack.c.b16 %v847, %v846
    %v907 = vpack.c.b16 %v848, %v847
    %v908 = vpack.c.b16 %v849, %v848
    %v909 = vpack.c.b16 %v850, %v849
    %v910 = vpack.c.b16 %v851, %v850
    %v911 = vpack.c.b16 %v852, %v851
    %v912 = vpack.c.b16 %v853, %v852
    %v972 = vunpack.c.l.b16 %v854
    %v973 = vunpack.c.l.b16 %v855
    %v974 = vunpack.c.l.b16 %v856
    %v975 = vunpack.c.l.b16 %v857
    %v976 = vunpack.c.l.b16 %v858
    %v977 = vunpack.c.l.b16 %v859
    %v978 = vunpack.c.l.b16 %v860
    %v979 = vunpack.c.l.b16 %v861
    %v980 = vunpack.c.l.b16 %v862
    %v981 = vunpack.c.l.b16 %v863
    %v982 = vunpack.c.l.b16 %v864
    %v983 = vunpack.c.l.b16 %v865
    %v984 = vunpack.c.l.b16 %v866
    %v985 = vunpack.c.l.b16 %v867
    %v986 = vunpack.c.l.b16 %v868
    %v987 = vunpack.c.l.b16 %v869
    %v988 = vunpack.c.l.b16 %v870
    %v989 = vunpack.c.l.b16 %v871
    %v990 = vunpack.c.l.b16 %v872
    %v991 = vunpack.c.l.b16 %v873
    %v992 = vunpack.c.l.b16 %v874
    %v993 = vunpack.c.l.b16 %v875
    %v994 = vunpack.c.l.b16 %v876
    %v995 = vunpack.c.l.b16 %v877
    %v996 = vunpack.c.l.b16 %v878
    %v997 = vunpack.c.l.b16 %v879
    %v998 = vunpack.c.l.b16 %v880
    %v999 = vunpack.c.l.b16 %v881
    %v1000 = vunpack.c.l.b16 %v882
    %v1001 = vunpack.c.l.b16 %v883
    %v1002 = vunpack.c.l.b16 %v884
    %v1003 = vunpack.c.l.b16 %v885
    %v1004 = vunpack.c.l.b16 %v886
    %v1005 = vunpack.c.l.b16 %v887
    %v1006 = vunpack.c.l.b16 %v888
    %v1007 = vunpack.c.l.b16 %v889
    %v1008 = vunpack.c.l.b16 %v890
    %v1009 = vunpack.c.l.b16 %v891
    %v1010 = vunpack.c.l.b16 %v892
    %v1011 = vunpack.c.l.b16 %v893
    %v1012 = vunpack.c.l.b16 %v894
    %v1013 = vunpack.c.l.b16 %v895
    %v1014 = vunpack.c.l.b16 %v896
    %v1015 = vunpack.c.l.b16 %v897
    %v1016 = vunpack.c.l.b16 %v898
    %v1017 = vunpack.c.l.b16 %v899
    %v1018 = vunpack.c.l.b16 %v900
    %v1019 = vunpack.c.l.b16 %v901
    %v1020 = vpack.c.b16 %v973, %v972
    %v1021 = vpack.c.b16 %v975, %v974
    %v1022 = vpack.c.b16 %v977, %v976
    %v1023 = vpack.c.b16 %v979, %v978
    %v1024 = vpack.c.b16 %v981, %v980
    %v1025 = vpack.c.b16 %v983, %v982
    %v1026 = vpack.c.b16 %v985, %v984
    %v1027 = vpack.c.b16 %v987, %v986
    %v1028 = vpack.c.b16 %v989, %v988
    %v1029 = vpack.c.b16 %v991, %v990
    %v1030 = vpack.c.b16 %v993, %v992
    %v1031 = vpack.c.b16 %v995, %v994
    %v1032 = vpack.c.b16 %v997, %v996
    %v1033 = vpack.c.b16 %v999, %v998
    %v1034 = vpack.c.b16 %v1001, %v1000
    %v1035 = vpack.c.b16 %v1003, %v1002
    %v1036 = vpack.c.b16 %v1005, %v1004
    %v1037 = vpack.c.b16 %v1007, %v1006
    %v1038 = vpack.c.b16 %v1009, %v1008
    %v1039 = vpack.c.b16 %v1011, %v1010
    %v1040 = vpack.c.b16 %v1013, %v1012
    %v1041 = vpack.c.b16 %v1015, %v1014
    %v1042 = vpack.c.b16 %v1017, %v1016
    %v1043 = vpack.c.b16 %v1019, %v1018
    %1068 = vmatprep.subr.bf16.mxu0 0
    %1069 = vmatpush1.bf16.msra.mxu0 %v1027
    %1070 = vmatprep.subr.bf16.mxu0 0
    %1071 = vmatpush1.bf16.msra.mxu0 %v1026
    %1072 = vmatprep.subr.bf16.mxu0 0
    %1073 = vmatpush1.bf16.msra.mxu0 %v1025
    %1074 = vmatprep.subr.bf16.mxu0 0
    %1075 = vmatpush1.bf16.msra.mxu0 %v1024
    %1076 = vmatprep.subr.bf16.mxu0 0
    %1077 = vmatpush1.bf16.msra.mxu0 %v1023
    %1078 = vmatprep.subr.bf16.mxu0 0
    %1079 = vmatpush1.bf16.msra.mxu0 %v1022
    %1080 = vmatprep.subr.bf16.mxu0 0
    %1081 = vmatpush1.bf16.msra.mxu0 %v1021
    %1082 = vmatprep.subr.bf16.mxu0 0
    %1083 = vmatpush1.bf16.msra.mxu0 %v1020
    %1084 = vmatprep.subr.bf16.mxu0 0
    %1085 = vmatpush2.bf16.msra.mxu0 %v1035
    %1086 = vmatprep.subr.bf16.mxu0 0
    %1087 = vmatpush2.bf16.msra.mxu0 %v1034
    %1088 = vmatprep.subr.bf16.mxu0 0
    %1089 = vmatpush2.bf16.msra.mxu0 %v1033
    %1090 = vmatprep.subr.bf16.mxu0 0
    %1091 = vmatpush2.bf16.msra.mxu0 %v1032
    %1092 = vmatprep.subr.bf16.mxu0 0
    %1093 = vmatpush2.bf16.msra.mxu0 %v1031
    %1094 = vmatprep.subr.bf16.mxu0 0
    %1095 = vmatpush2.bf16.msra.mxu0 %v1030
    %1096 = vmatprep.subr.bf16.mxu0 0
    %1097 = vmatpush2.bf16.msra.mxu0 %v1029
    %1098 = vmatprep.subr.bf16.mxu0 0
    %1099 = vmatpush2.bf16.msra.mxu0 %v1028
    %1100 = vmatprep.mubr.bf16.mxu0 %v903
    %1101 = vmatmul.mubr.bf16.gmra.mxu0 %v902
    %v1102 = vpop.f32.mrf.mxu0
    %v1103 = vadd.f32 0.0, %v1102
    %v1104 = vpop.f32.mrf.mxu0
    %v1105 = vpop.f32.mrf.mxu0
    %v1106 = vadd.f32 0.0, %v1105
    %v1107 = vpop.f32.mrf.mxu0
    %1108 = vmatprep.mubr.bf16.mxu0 %v905
    %1109 = vmatmul.mubr.bf16.gmra.mxu0 %v904
    %v1110 = vpop.f32.mrf.mxu0
    %v1111 = vadd.f32 0.0, %v1110
    %v1112 = vpop.f32.mrf.mxu0
    %v1113 = vpop.f32.mrf.mxu0
    %v1114 = vadd.f32 0.0, %v1113
    %v1115 = vpop.f32.mrf.mxu0
    %1116 = vmatprep.mubr.bf16.mxu0 %v907
    %1117 = vmatmul.mubr.bf16.gmra.mxu0 %v906
    %v1118 = vpop.f32.mrf.mxu0
    %v1119 = vadd.f32 0.0, %v1118
    %v1120 = vpop.f32.mrf.mxu0
    %v1121 = vpop.f32.mrf.mxu0
    %v1122 = vadd.f32 0.0, %v1121
    %v1123 = vpop.f32.mrf.mxu0
    %1124 = vmatprep.mubr.bf16.mxu0 %v909
    %1125 = vmatmul.mubr.bf16.gmra.mxu0 %v908
    %v1126 = vpop.f32.mrf.mxu0
    %v1127 = vadd.f32 0.0, %v1126
    %v1128 = vpop.f32.mrf.mxu0
    %v1129 = vpop.f32.mrf.mxu0
    %v1130 = vadd.f32 0.0, %v1129
    %v1131 = vpop.f32.mrf.mxu0
    %1132 = vmatprep.mubr.bf16.mxu0 %v911
    %1133 = vmatmul.mubr.bf16.gmra.mxu0 %v910
    %v1134 = vpop.f32.mrf.mxu0
    %v1135 = vadd.f32 0.0, %v1134
    %v1136 = vpop.f32.mrf.mxu0
    %v1137 = vpop.f32.mrf.mxu0
    %v1138 = vadd.f32 0.0, %v1137
    %v1139 = vpop.f32.mrf.mxu0
    %1140 = vdwg.mxu0
    %1141 = vmatprep.subr.bf16.mxu0 0
    %1142 = vmatpush1.bf16.msra.mxu0 %v1043
    %1143 = vmatprep.subr.bf16.mxu0 0
    %1144 = vmatpush1.bf16.msra.mxu0 %v1042
    %1145 = vmatprep.subr.bf16.mxu0 0
    %1146 = vmatpush1.bf16.msra.mxu0 %v1041
    %1147 = vmatprep.subr.bf16.mxu0 0
    %1148 = vmatpush1.bf16.msra.mxu0 %v1040
    %1149 = vmatprep.subr.bf16.mxu0 0
    %1150 = vmatpush1.bf16.msra.mxu0 %v1039
    %1151 = vmatprep.subr.bf16.mxu0 0
    %1152 = vmatpush1.bf16.msra.mxu0 %v1038
    %1153 = vmatprep.subr.bf16.mxu0 0
    %1154 = vmatpush1.bf16.msra.mxu0 %v1037
    %1155 = vmatprep.subr.bf16.mxu0 0
    %1156 = vmatpush1.bf16.msra.mxu0 %v1036
    %1157 = vmatprep.subr.bf16.mxu0 0
    %1158 = vmatpush2.bf16.msra.mxu0 0
    %1159 = vmatprep.subr.bf16.mxu0 0
    %1160 = vmatpush2.bf16.msra.mxu0 0
    %1161 = vmatprep.subr.bf16.mxu0 0
    %1162 = vmatpush2.bf16.msra.mxu0 0
    %1163 = vmatprep.subr.bf16.mxu0 0
    %1164 = vmatpush2.bf16.msra.mxu0 0
    %1165 = vmatprep.subr.bf16.mxu0 0
    %1166 = vmatpush2.bf16.msra.mxu0 0
    %1167 = vmatprep.subr.bf16.mxu0 0
    %1168 = vmatpush2.bf16.msra.mxu0 0
    %1169 = vmatprep.subr.bf16.mxu0 0
    %1170 = vmatpush2.bf16.msra.mxu0 0
    %1171 = vmatprep.subr.bf16.mxu0 0
    %1172 = vmatpush2.bf16.msra.mxu0 0
    %1173 = vmatprep.mubr.bf16.mxu0 0
    %1174 = vmatmul.mubr.bf16.gmra.mxu0 %v904
    %v1175 = vpop.f32.mrf.mxu0
    %v1176 = vadd.f32 %v1103, %v1175
    %v1177 = vpop.f32.mrf.mxu0
    %v1178 = vpop.f32.mrf.mxu0
    %v1179 = vadd.f32 %v1106, %v1178
    %v1180 = vpop.f32.mrf.mxu0
    %1181 = vmatprep.mubr.bf16.mxu0 0
    %1182 = vmatmul.mubr.bf16.gmra.mxu0 %v906
    %v1183 = vpop.f32.mrf.mxu0
    %v1184 = vadd.f32 %v1111, %v1183
    %v1185 = vpop.f32.mrf.mxu0
    %v1186 = vpop.f32.mrf.mxu0
    %v1187 = vadd.f32 %v1114, %v1186
    %v1188 = vpop.f32.mrf.mxu0
    %1189 = vmatprep.mubr.bf16.mxu0 0
    %1190 = vmatmul.mubr.bf16.gmra.mxu0 %v908
    %v1191 = vpop.f32.mrf.mxu0
    %v1192 = vadd.f32 %v1119, %v1191
    %v1193 = vpop.f32.mrf.mxu0
    %v1194 = vpop.f32.mrf.mxu0
    %v1195 = vadd.f32 %v1122, %v1194
    %v1196 = vpop.f32.mrf.mxu0
    %1197 = vmatprep.mubr.bf16.mxu0 0
    %1198 = vmatmul.mubr.bf16.gmra.mxu0 %v910
    %v1199 = vpop.f32.mrf.mxu0
    %v1200 = vadd.f32 %v1127, %v1199
    %v1201 = vpop.f32.mrf.mxu0
    %v1202 = vpop.f32.mrf.mxu0
    %v1203 = vadd.f32 %v1130, %v1202
    %v1204 = vpop.f32.mrf.mxu0
    %1205 = vmatprep.mubr.bf16.mxu0 0
    %1206 = vmatmul.mubr.bf16.gmra.mxu0 %v912
    %v1207 = vpop.f32.mrf.mxu0
    %v1208 = vadd.f32 %v1135, %v1207
    %v1209 = vpop.f32.mrf.mxu0
    %v1210 = vpop.f32.mrf.mxu0
    %v1211 = vadd.f32 %v1138, %v1210
    %v1212 = vpop.f32.mrf.mxu0
    %1213 = vdwg.mxu0
    %v1214 = vld [vmem:[%s5] sm:$0x1]
    %v1216 = vlaneseq
    %v1217 = vshrl.u32 %v1216, 7
    %v1218 = vsub.s32 0, %v1217
    %v1219 = vrot.slane %v1214, %v1218
    %v1221 = vmul.f32 %v1176, %v1219
    %v1222 = vmul.f32 %v1179, %v1219
    %v1223 = vmul.f32 %v1184, %v1219
    %v1224 = vmul.f32 %v1187, %v1219
    %v1225 = vmul.f32 %v1192, %v1219
    %v1226 = vmul.f32 %v1195, %v1219
    %v1227 = vmul.f32 %v1200, %v1219
    %v1228 = vmul.f32 %v1203, %v1219
    %v1229 = vmul.f32 %v1208, %v1219
    %v1230 = vmul.f32 %v1211, %v1219
    %v1231 = vld [vmem:[%s6] sm:$0x1]
    %v1233 = vlaneseq
    %v1234 = vshrl.u32 %v1233, 7
    %v1235 = vsub.s32 0, %v1234
    %v1236 = vrot.slane %v1231, %v1235
    %v1238 = vadd.f32 %v1221, %v1236
    %v1239 = vadd.f32 %v1222, %v1236
    %v1240 = vadd.f32 %v1223, %v1236
    %v1241 = vadd.f32 %v1224, %v1236
    %v1242 = vadd.f32 %v1225, %v1236
    %v1243 = vadd.f32 %v1226, %v1236
    %v1244 = vadd.f32 %v1227, %v1236
    %v1245 = vadd.f32 %v1228, %v1236
    %v1246 = vadd.f32 %v1229, %v1236
    %v1247 = vadd.f32 %v1230, %v1236
    %vm1248 = vcmp.gt.f32.partialorder %v1238, 0.0
    %vm1249 = vcmp.gt.f32.partialorder %v1239, 0.0
    %vm1250 = vcmp.gt.f32.partialorder %v1240, 0.0
    %vm1251 = vcmp.gt.f32.partialorder %v1241, 0.0
    %vm1252 = vcmp.gt.f32.partialorder %v1242, 0.0
    %vm1253 = vcmp.gt.f32.partialorder %v1243, 0.0
    %vm1254 = vcmp.gt.f32.partialorder %v1244, 0.0
    %vm1255 = vcmp.gt.f32.partialorder %v1245, 0.0
    %vm1256 = vcmp.gt.f32.partialorder %v1246, 0.0
    %vm1257 = vcmp.gt.f32.partialorder %v1247, 0.0
    %v1258 = vmul.f32 %v1238, 0.01
    %v1259 = vmul.f32 %v1239, 0.01
    %v1260 = vmul.f32 %v1240, 0.01
    %v1261 = vmul.f32 %v1241, 0.01
    %v1262 = vmul.f32 %v1242, 0.01
    %v1263 = vmul.f32 %v1243, 0.01
    %v1264 = vmul.f32 %v1244, 0.01
    %v1265 = vmul.f32 %v1245, 0.01
    %v1266 = vmul.f32 %v1246, 0.01
    %v1267 = vmul.f32 %v1247, 0.01
    %v1268 = vsel %vm1248, %v1238, %v1258
    %v1269 = vsel %vm1249, %v1239, %v1259
    %v1270 = vsel %vm1250, %v1240, %v1260
    %v1271 = vsel %vm1251, %v1241, %v1261
    %v1272 = vsel %vm1252, %v1242, %v1262
    %v1273 = vsel %vm1253, %v1243, %v1263
    %v1274 = vsel %vm1254, %v1244, %v1264
    %v1275 = vsel %vm1255, %v1245, %v1265
    %v1276 = vsel %vm1256, %v1246, %v1266
    %v1277 = vsel %vm1257, %v1247, %v1267
    %v1278 = vpack.c.bf16 %v1268, %v1268
    %v1279 = vpack.c.bf16 %v1269, %v1269
    %v1280 = vpack.c.bf16 %v1270, %v1270
    %v1281 = vpack.c.bf16 %v1271, %v1271
    %v1282 = vpack.c.bf16 %v1272, %v1272
    %v1283 = vpack.c.bf16 %v1273, %v1273
    %v1284 = vpack.c.bf16 %v1274, %v1274
    %v1285 = vpack.c.bf16 %v1275, %v1275
    %v1286 = vpack.c.bf16 %v1276, %v1276
    %v1287 = vpack.c.bf16 %v1277, %v1277
    %v1298 = vunpack.c.l.b16 %v1278
    %v1299 = vunpack.c.l.b16 %v1279
    %v1300 = vunpack.c.l.b16 %v1280
    %v1301 = vunpack.c.l.b16 %v1281
    %v1302 = vunpack.c.l.b16 %v1282
    %v1303 = vunpack.c.l.b16 %v1283
    %v1304 = vunpack.c.l.b16 %v1284
    %v1305 = vunpack.c.l.b16 %v1285
    %v1306 = vunpack.c.l.b16 %v1286
    %v1307 = vunpack.c.l.b16 %v1287
    %v1308 = vld [vmem:[#allocation10] sm:$0xff]
    %v1309 = vld [vmem:[#allocation10 + $0x8] sm:$0xff]
    %v1310 = vld [vmem:[#allocation10 + $0x10] sm:$0xff]
    %v1311 = vld [vmem:[#allocation10 + $0x18] sm:$0xff]
    %v1312 = vld [vmem:[#allocation10 + $0x20] sm:$0xff]
    %v1313 = vld [vmem:[#allocation10 + $0x28] sm:$0xff]
    %v1314 = vld [vmem:[#allocation10 + $0x30] sm:$0xff]
    %v1315 = vld [vmem:[#allocation10 + $0x38] sm:$0xff]
    %v1316 = vld [vmem:[#allocation10 + $0x40] sm:$0xff]
    %v1317 = vld [vmem:[#allocation10 + $0x48] sm:$0xff]
    %v1318 = vld [vmem:[#allocation10 + $0x50] sm:$0xff]
    %v1319 = vld [vmem:[#allocation10 + $0x58] sm:$0xff]
    %v1320 = vld [vmem:[#allocation10 + $0x60] sm:$0xff]
    %v1321 = vld [vmem:[#allocation10 + $0x68] sm:$0xff]
    %v1322 = vld [vmem:[#allocation10 + $0x70] sm:$0xff]
    %v1323 = vld [vmem:[#allocation10 + $0x78] sm:$0xff]
    %v1324 = vld [vmem:[#allocation10 + $0x80] sm:$0xff]
    %v1325 = vld [vmem:[#allocation10 + $0x88] sm:$0xff]
    %v1326 = vld [vmem:[#allocation10 + $0x90] sm:$0xff]
    %v1327 = vld [vmem:[#allocation10 + $0x98] sm:$0xff]
    %v1328 = vld [vmem:[#allocation10 + $0xa0] sm:$0xff]
    %v1329 = vld [vmem:[#allocation10 + $0xa8] sm:$0xff]
    %v1330 = vld [vmem:[#allocation10 + $0xb0] sm:$0xff]
    %v1331 = vld [vmem:[#allocation10 + $0xb8] sm:$0xff]
    %v1332 = vld [vmem:[#allocation10 + $0xc0] sm:$0xff]
    %v1333 = vld [vmem:[#allocation10 + $0xc8] sm:$0xff]
    %v1334 = vld [vmem:[#allocation10 + $0xd0] sm:$0xff]
    %v1335 = vld [vmem:[#allocation10 + $0xd8] sm:$0xff]
    %v1336 = vld [vmem:[#allocation10 + $0xe0] sm:$0xff]
    %v1337 = vld [vmem:[#allocation10 + $0xe8] sm:$0xff]
    %v1338 = vld [vmem:[#allocation10 + $0xf0] sm:$0xff]
    %v1339 = vld [vmem:[#allocation10 + $0xf8] sm:$0xff]
    %v1340 = vld [vmem:[#allocation10 + $0x100] sm:$0xff]
    %v1341 = vld [vmem:[#allocation10 + $0x108] sm:$0xff]
    %v1342 = vld [vmem:[#allocation10 + $0x110] sm:$0xff]
    %v1343 = vld [vmem:[#allocation10 + $0x118] sm:$0xff]
    %v1344 = vld [vmem:[#allocation10 + $0x120] sm:$0xff]
    %v1345 = vld [vmem:[#allocation10 + $0x128] sm:$0xff]
    %v1346 = vld [vmem:[#allocation10 + $0x130] sm:$0xff]
    %v1347 = vld [vmem:[#allocation10 + $0x138] sm:$0xff]
    %v1348 = vld [vmem:[#allocation10 + $0x140] sm:$0xff]
    %v1349 = vld [vmem:[#allocation10 + $0x148] sm:$0xff]
    %v1350 = vld [vmem:[#allocation10 + $0x150] sm:$0xff]
    %v1351 = vld [vmem:[#allocation10 + $0x158] sm:$0xff]
    %v1352 = vld [vmem:[#allocation10 + $0x160] sm:$0xff]
    %v1353 = vld [vmem:[#allocation10 + $0x168] sm:$0xff]
    %v1354 = vld [vmem:[#allocation10 + $0x170] sm:$0xff]
    %v1355 = vld [vmem:[#allocation10 + $0x178] sm:$0xff]
    %v1356 = vpack.c.b16 %v1299, %v1298
    %v1357 = vpack.c.b16 %v1300, %v1299
    %v1358 = vpack.c.b16 %v1301, %v1300
    %v1359 = vpack.c.b16 %v1302, %v1301
    %v1360 = vpack.c.b16 %v1303, %v1302
    %v1361 = vpack.c.b16 %v1304, %v1303
    %v1362 = vpack.c.b16 %v1305, %v1304
    %v1363 = vpack.c.b16 %v1306, %v1305
    %v1364 = vpack.c.b16 %v1307, %v1306
    %v1422 = vunpack.c.l.b16 %v1308
    %v1423 = vunpack.c.h.b16 %v1308
    %v1424 = vunpack.c.l.b16 %v1309
    %v1425 = vunpack.c.h.b16 %v1309
    %v1426 = vunpack.c.l.b16 %v1310
    %v1427 = vunpack.c.h.b16 %v1310
    %v1428 = vunpack.c.l.b16 %v1311
    %v1429 = vunpack.c.h.b16 %v1311
    %v1430 = vunpack.c.l.b16 %v1312
    %v1431 = vunpack.c.h.b16 %v1312
    %v1432 = vunpack.c.l.b16 %v1313
    %v1433 = vunpack.c.h.b16 %v1313
    %v1434 = vunpack.c.l.b16 %v1314
    %v1435 = vunpack.c.h.b16 %v1314
    %v1436 = vunpack.c.l.b16 %v1315
    %v1437 = vunpack.c.h.b16 %v1315
    %v1438 = vunpack.c.l.b16 %v1316
    %v1439 = vunpack.c.h.b16 %v1316
    %v1440 = vunpack.c.l.b16 %v1317
    %v1441 = vunpack.c.h.b16 %v1317
    %v1442 = vunpack.c.l.b16 %v1318
    %v1443 = vunpack.c.h.b16 %v1318
    %v1444 = vunpack.c.l.b16 %v1319
    %v1445 = vunpack.c.h.b16 %v1319
    %v1446 = vunpack.c.l.b16 %v1320
    %v1447 = vunpack.c.h.b16 %v1320
    %v1448 = vunpack.c.l.b16 %v1321
    %v1449 = vunpack.c.h.b16 %v1321
    %v1450 = vunpack.c.l.b16 %v1322
    %v1451 = vunpack.c.h.b16 %v1322
    %v1452 = vunpack.c.l.b16 %v1323
    %v1453 = vunpack.c.h.b16 %v1323
    %v1454 = vunpack.c.l.b16 %v1324
    %v1455 = vunpack.c.h.b16 %v1324
    %v1456 = vunpack.c.l.b16 %v1325
    %v1457 = vunpack.c.h.b16 %v1325
    %v1458 = vunpack.c.l.b16 %v1326
    %v1459 = vunpack.c.h.b16 %v1326
    %v1460 = vunpack.c.l.b16 %v1327
    %v1461 = vunpack.c.h.b16 %v1327
    %v1462 = vunpack.c.l.b16 %v1328
    %v1463 = vunpack.c.h.b16 %v1328
    %v1464 = vunpack.c.l.b16 %v1329
    %v1465 = vunpack.c.h.b16 %v1329
    %v1466 = vunpack.c.l.b16 %v1330
    %v1467 = vunpack.c.h.b16 %v1330
    %v1468 = vunpack.c.l.b16 %v1331
    %v1469 = vunpack.c.h.b16 %v1331
    %v1470 = vunpack.c.l.b16 %v1332
    %v1471 = vunpack.c.h.b16 %v1332
    %v1472 = vunpack.c.l.b16 %v1333
    %v1473 = vunpack.c.h.b16 %v1333
    %v1474 = vunpack.c.l.b16 %v1334
    %v1475 = vunpack.c.h.b16 %v1334
    %v1476 = vunpack.c.l.b16 %v1335
    %v1477 = vunpack.c.h.b16 %v1335
    %v1478 = vunpack.c.l.b16 %v1336
    %v1479 = vunpack.c.h.b16 %v1336
    %v1480 = vunpack.c.l.b16 %v1337
    %v1481 = vunpack.c.h.b16 %v1337
    %v1482 = vunpack.c.l.b16 %v1338
    %v1483 = vunpack.c.h.b16 %v1338
    %v1484 = vunpack.c.l.b16 %v1339
    %v1485 = vunpack.c.h.b16 %v1339
    %v1486 = vunpack.c.l.b16 %v1340
    %v1487 = vunpack.c.h.b16 %v1340
    %v1488 = vunpack.c.l.b16 %v1341
    %v1489 = vunpack.c.h.b16 %v1341
    %v1490 = vunpack.c.l.b16 %v1342
    %v1491 = vunpack.c.h.b16 %v1342
    %v1492 = vunpack.c.l.b16 %v1343
    %v1493 = vunpack.c.h.b16 %v1343
    %v1494 = vunpack.c.l.b16 %v1344
    %v1495 = vunpack.c.h.b16 %v1344
    %v1496 = vunpack.c.l.b16 %v1345
    %v1497 = vunpack.c.h.b16 %v1345
    %v1498 = vunpack.c.l.b16 %v1346
    %v1499 = vunpack.c.h.b16 %v1346
    %v1500 = vunpack.c.l.b16 %v1347
    %v1501 = vunpack.c.h.b16 %v1347
    %v1502 = vunpack.c.l.b16 %v1348
    %v1503 = vunpack.c.h.b16 %v1348
    %v1504 = vunpack.c.l.b16 %v1349
    %v1505 = vunpack.c.h.b16 %v1349
    %v1506 = vunpack.c.l.b16 %v1350
    %v1507 = vunpack.c.h.b16 %v1350
    %v1508 = vunpack.c.l.b16 %v1351
    %v1509 = vunpack.c.h.b16 %v1351
    %v1510 = vunpack.c.l.b16 %v1352
    %v1511 = vunpack.c.h.b16 %v1352
    %v1512 = vunpack.c.l.b16 %v1353
    %v1513 = vunpack.c.h.b16 %v1353
    %v1514 = vunpack.c.l.b16 %v1354
    %v1515 = vunpack.c.h.b16 %v1354
    %v1516 = vunpack.c.l.b16 %v1355
    %v1517 = vunpack.c.h.b16 %v1355
    %v1518 = vpack.c.b16 %v1424, %v1422
    %v1519 = vpack.c.b16 %v1425, %v1423
    %v1520 = vpack.c.b16 %v1428, %v1426
    %v1521 = vpack.c.b16 %v1429, %v1427
    %v1522 = vpack.c.b16 %v1432, %v1430
    %v1523 = vpack.c.b16 %v1433, %v1431
    %v1524 = vpack.c.b16 %v1436, %v1434
    %v1525 = vpack.c.b16 %v1437, %v1435
    %v1526 = vpack.c.b16 %v1440, %v1438
    %v1527 = vpack.c.b16 %v1441, %v1439
    %v1528 = vpack.c.b16 %v1444, %v1442
    %v1529 = vpack.c.b16 %v1445, %v1443
    %v1530 = vpack.c.b16 %v1448, %v1446
    %v1531 = vpack.c.b16 %v1449, %v1447
    %v1532 = vpack.c.b16 %v1452, %v1450
    %v1533 = vpack.c.b16 %v1453, %v1451
    %v1534 = vpack.c.b16 %v1456, %v1454
    %v1535 = vpack.c.b16 %v1457, %v1455
    %v1536 = vpack.c.b16 %v1460, %v1458
    %v1537 = vpack.c.b16 %v1461, %v1459
    %v1538 = vpack.c.b16 %v1464, %v1462
    %v1539 = vpack.c.b16 %v1465, %v1463
    %v1540 = vpack.c.b16 %v1468, %v1466
    %v1541 = vpack.c.b16 %v1469, %v1467
    %v1542 = vpack.c.b16 %v1472, %v1470
    %v1543 = vpack.c.b16 %v1473, %v1471
    %v1544 = vpack.c.b16 %v1476, %v1474
    %v1545 = vpack.c.b16 %v1477, %v1475
    %v1546 = vpack.c.b16 %v1480, %v1478
    %v1547 = vpack.c.b16 %v1481, %v1479
    %v1548 = vpack.c.b16 %v1484, %v1482
    %v1549 = vpack.c.b16 %v1485, %v1483
    %v1550 = vpack.c.b16 %v1488, %v1486
    %v1551 = vpack.c.b16 %v1489, %v1487
    %v1552 = vpack.c.b16 %v1492, %v1490
    %v1553 = vpack.c.b16 %v1493, %v1491
    %v1554 = vpack.c.b16 %v1496, %v1494
    %v1555 = vpack.c.b16 %v1497, %v1495
    %v1556 = vpack.c.b16 %v1500, %v1498
    %v1557 = vpack.c.b16 %v1501, %v1499
    %v1558 = vpack.c.b16 %v1504, %v1502
    %v1559 = vpack.c.b16 %v1505, %v1503
    %v1560 = vpack.c.b16 %v1508, %v1506
    %v1561 = vpack.c.b16 %v1509, %v1507
    %v1562 = vpack.c.b16 %v1512, %v1510
    %v1563 = vpack.c.b16 %v1513, %v1511
    %v1564 = vpack.c.b16 %v1516, %v1514
    %v1565 = vpack.c.b16 %v1517, %v1515
    %1614 = vmatprep.subr.bf16.mxu0 %v1533
    %1615 = vmatpush1.bf16.msra.mxu0 %v1532
    %1616 = vmatprep.subr.bf16.mxu0 %v1531
    %1617 = vmatpush1.bf16.msra.mxu0 %v1530
    %1618 = vmatprep.subr.bf16.mxu0 %v1529
    %1619 = vmatpush1.bf16.msra.mxu0 %v1528
    %1620 = vmatprep.subr.bf16.mxu0 %v1527
    %1621 = vmatpush1.bf16.msra.mxu0 %v1526
    %1622 = vmatprep.subr.bf16.mxu0 %v1525
    %1623 = vmatpush1.bf16.msra.mxu0 %v1524
    %1624 = vmatprep.subr.bf16.mxu0 %v1523
    %1625 = vmatpush1.bf16.msra.mxu0 %v1522
    %1626 = vmatprep.subr.bf16.mxu0 %v1521
    %1627 = vmatpush1.bf16.msra.mxu0 %v1520
    %1628 = vmatprep.subr.bf16.mxu0 %v1519
    %1629 = vmatpush1.bf16.msra.mxu0 %v1518
    %1630 = vmatprep.subr.bf16.mxu0 %v1549
    %1631 = vmatpush2.bf16.msra.mxu0 %v1548
    %1632 = vmatprep.subr.bf16.mxu0 %v1547
    %1633 = vmatpush2.bf16.msra.mxu0 %v1546
    %1634 = vmatprep.subr.bf16.mxu0 %v1545
    %1635 = vmatpush2.bf16.msra.mxu0 %v1544
    %1636 = vmatprep.subr.bf16.mxu0 %v1543
    %1637 = vmatpush2.bf16.msra.mxu0 %v1542
    %1638 = vmatprep.subr.bf16.mxu0 %v1541
    %1639 = vmatpush2.bf16.msra.mxu0 %v1540
    %1640 = vmatprep.subr.bf16.mxu0 %v1539
    %1641 = vmatpush2.bf16.msra.mxu0 %v1538
    %1642 = vmatprep.subr.bf16.mxu0 %v1537
    %1643 = vmatpush2.bf16.msra.mxu0 %v1536
    %1644 = vmatprep.subr.bf16.mxu0 %v1535
    %1645 = vmatpush2.bf16.msra.mxu0 %v1534
    %1646 = vmatprep.mubr.bf16.mxu0 %v1357
    %1647 = vmatmul.mubr.bf16.gmra.mxu0 %v1356
    %v1648 = vpop.f32.mrf.mxu0
    %v1649 = vadd.f32 0.0, %v1648
    %v1650 = vpop.f32.mrf.mxu0
    %v1651 = vadd.f32 0.0, %v1650
    %v1652 = vpop.f32.mrf.mxu0
    %v1653 = vadd.f32 0.0, %v1652
    %v1654 = vpop.f32.mrf.mxu0
    %v1655 = vadd.f32 0.0, %v1654
    %1656 = vmatprep.mubr.bf16.mxu0 %v1359
    %1657 = vmatmul.mubr.bf16.gmra.mxu0 %v1358
    %v1658 = vpop.f32.mrf.mxu0
    %v1659 = vadd.f32 0.0, %v1658
    %v1660 = vpop.f32.mrf.mxu0
    %v1661 = vadd.f32 0.0, %v1660
    %v1662 = vpop.f32.mrf.mxu0
    %v1663 = vadd.f32 0.0, %v1662
    %v1664 = vpop.f32.mrf.mxu0
    %v1665 = vadd.f32 0.0, %v1664
    %1666 = vmatprep.mubr.bf16.mxu0 %v1361
    %1667 = vmatmul.mubr.bf16.gmra.mxu0 %v1360
    %v1668 = vpop.f32.mrf.mxu0
    %v1669 = vadd.f32 0.0, %v1668
    %v1670 = vpop.f32.mrf.mxu0
    %v1671 = vadd.f32 0.0, %v1670
    %v1672 = vpop.f32.mrf.mxu0
    %v1673 = vadd.f32 0.0, %v1672
    %v1674 = vpop.f32.mrf.mxu0
    %v1675 = vadd.f32 0.0, %v1674
    %1676 = vmatprep.mubr.bf16.mxu0 %v1363
    %1677 = vmatmul.mubr.bf16.gmra.mxu0 %v1362
    %v1678 = vpop.f32.mrf.mxu0
    %v1679 = vadd.f32 0.0, %v1678
    %v1680 = vpop.f32.mrf.mxu0
    %v1681 = vadd.f32 0.0, %v1680
    %v1682 = vpop.f32.mrf.mxu0
    %v1683 = vadd.f32 0.0, %v1682
    %v1684 = vpop.f32.mrf.mxu0
    %v1685 = vadd.f32 0.0, %v1684
    %1686 = vdwg.mxu0
    %1687 = vmatprep.subr.bf16.mxu0 %v1565
    %1688 = vmatpush1.bf16.msra.mxu0 %v1564
    %1689 = vmatprep.subr.bf16.mxu0 %v1563
    %1690 = vmatpush1.bf16.msra.mxu0 %v1562
    %1691 = vmatprep.subr.bf16.mxu0 %v1561
    %1692 = vmatpush1.bf16.msra.mxu0 %v1560
    %1693 = vmatprep.subr.bf16.mxu0 %v1559
    %1694 = vmatpush1.bf16.msra.mxu0 %v1558
    %1695 = vmatprep.subr.bf16.mxu0 %v1557
    %1696 = vmatpush1.bf16.msra.mxu0 %v1556
    %1697 = vmatprep.subr.bf16.mxu0 %v1555
    %1698 = vmatpush1.bf16.msra.mxu0 %v1554
    %1699 = vmatprep.subr.bf16.mxu0 %v1553
    %1700 = vmatpush1.bf16.msra.mxu0 %v1552
    %1701 = vmatprep.subr.bf16.mxu0 %v1551
    %1702 = vmatpush1.bf16.msra.mxu0 %v1550
    %1703 = vmatprep.subr.bf16.mxu0 0
    %1704 = vmatpush2.bf16.msra.mxu0 0
    %1705 = vmatprep.subr.bf16.mxu0 0
    %1706 = vmatpush2.bf16.msra.mxu0 0
    %1707 = vmatprep.subr.bf16.mxu0 0
    %1708 = vmatpush2.bf16.msra.mxu0 0
    %1709 = vmatprep.subr.bf16.mxu0 0
    %1710 = vmatpush2.bf16.msra.mxu0 0
    %1711 = vmatprep.subr.bf16.mxu0 0
    %1712 = vmatpush2.bf16.msra.mxu0 0
    %1713 = vmatprep.subr.bf16.mxu0 0
    %1714 = vmatpush2.bf16.msra.mxu0 0
    %1715 = vmatprep.subr.bf16.mxu0 0
    %1716 = vmatpush2.bf16.msra.mxu0 0
    %1717 = vmatprep.subr.bf16.mxu0 0
    %1718 = vmatpush2.bf16.msra.mxu0 0
    %1719 = vmatprep.mubr.bf16.mxu0 0
    %1720 = vmatmul.mubr.bf16.gmra.mxu0 %v1358
    %v1721 = vpop.f32.mrf.mxu0
    %v1722 = vadd.f32 %v1649, %v1721
    %v1723 = vpop.f32.mrf.mxu0
    %v1724 = vadd.f32 %v1651, %v1723
    %v1725 = vpop.f32.mrf.mxu0
    %v1726 = vadd.f32 %v1653, %v1725
    %v1727 = vpop.f32.mrf.mxu0
    %v1728 = vadd.f32 %v1655, %v1727
    %1729 = vmatprep.mubr.bf16.mxu0 0
    %1730 = vmatmul.mubr.bf16.gmra.mxu0 %v1360
    %v1731 = vpop.f32.mrf.mxu0
    %v1732 = vadd.f32 %v1659, %v1731
    %v1733 = vpop.f32.mrf.mxu0
    %v1734 = vadd.f32 %v1661, %v1733
    %v1735 = vpop.f32.mrf.mxu0
    %v1736 = vadd.f32 %v1663, %v1735
    %v1737 = vpop.f32.mrf.mxu0
    %v1738 = vadd.f32 %v1665, %v1737
    %1739 = vmatprep.mubr.bf16.mxu0 0
    %1740 = vmatmul.mubr.bf16.gmra.mxu0 %v1362
    %v1741 = vpop.f32.mrf.mxu0
    %v1742 = vadd.f32 %v1669, %v1741
    %v1743 = vpop.f32.mrf.mxu0
    %v1744 = vadd.f32 %v1671, %v1743
    %v1745 = vpop.f32.mrf.mxu0
    %v1746 = vadd.f32 %v1673, %v1745
    %v1747 = vpop.f32.mrf.mxu0
    %v1748 = vadd.f32 %v1675, %v1747
    %1749 = vmatprep.mubr.bf16.mxu0 0
    %1750 = vmatmul.mubr.bf16.gmra.mxu0 %v1364
    %v1751 = vpop.f32.mrf.mxu0
    %v1752 = vadd.f32 %v1679, %v1751
    %v1753 = vpop.f32.mrf.mxu0
    %v1754 = vadd.f32 %v1681, %v1753
    %v1755 = vpop.f32.mrf.mxu0
    %v1756 = vadd.f32 %v1683, %v1755
    %v1757 = vpop.f32.mrf.mxu0
    %v1758 = vadd.f32 %v1685, %v1757
    %1759 = vdwg.mxu0
    %v1760 = vld [vmem:[%s8] sm:$0x3]
    %v1762 = vlaneseq
    %v1763 = vshrl.u32 %v1762, 7
    %v1764 = vsub.s32 0, %v1763
    %v1765 = vrot.slane %v1760, %v1764
    %v1766 = vlaneseq
    %v1767 = vshrl.u32 %v1766, 7
    %v1768 = vsub.s32 1, %v1767
    %v1769 = vrot.slane %v1760, %v1768
    %v1772 = vmul.f32 %v1722, %v1765
    %v1773 = vmul.f32 %v1724, %v1769
    %v1774 = vmul.f32 %v1726, %v1765
    %v1775 = vmul.f32 %v1728, %v1769
    %v1776 = vmul.f32 %v1732, %v1765
    %v1777 = vmul.f32 %v1734, %v1769
    %v1778 = vmul.f32 %v1736, %v1765
    %v1779 = vmul.f32 %v1738, %v1769
    %v1780 = vmul.f32 %v1742, %v1765
    %v1781 = vmul.f32 %v1744, %v1769
    %v1782 = vmul.f32 %v1746, %v1765
    %v1783 = vmul.f32 %v1748, %v1769
    %v1784 = vmul.f32 %v1752, %v1765
    %v1785 = vmul.f32 %v1754, %v1769
    %v1786 = vmul.f32 %v1756, %v1765
    %v1787 = vmul.f32 %v1758, %v1769
    %v1788 = vld [vmem:[%s9] sm:$0x3]
    %v1790 = vlaneseq
    %v1791 = vshrl.u32 %v1790, 7
    %v1792 = vsub.s32 0, %v1791
    %v1793 = vrot.slane %v1788, %v1792
    %v1794 = vlaneseq
    %v1795 = vshrl.u32 %v1794, 7
    %v1796 = vsub.s32 1, %v1795
    %v1797 = vrot.slane %v1788, %v1796
    %v1800 = vadd.f32 %v1772, %v1793
    %v1801 = vadd.f32 %v1773, %v1797
    %v1802 = vadd.f32 %v1774, %v1793
    %v1803 = vadd.f32 %v1775, %v1797
    %v1804 = vadd.f32 %v1776, %v1793
    %v1805 = vadd.f32 %v1777, %v1797
    %v1806 = vadd.f32 %v1778, %v1793
    %v1807 = vadd.f32 %v1779, %v1797
    %v1808 = vadd.f32 %v1780, %v1793
    %v1809 = vadd.f32 %v1781, %v1797
    %v1810 = vadd.f32 %v1782, %v1793
    %v1811 = vadd.f32 %v1783, %v1797
    %v1812 = vadd.f32 %v1784, %v1793
    %v1813 = vadd.f32 %v1785, %v1797
    %v1814 = vadd.f32 %v1786, %v1793
    %v1815 = vadd.f32 %v1787, %v1797
    %vm1816 = vcmp.gt.f32.partialorder %v1800, 0.0
    %vm1817 = vcmp.gt.f32.partialorder %v1801, 0.0
    %vm1818 = vcmp.gt.f32.partialorder %v1802, 0.0
    %vm1819 = vcmp.gt.f32.partialorder %v1803, 0.0
    %vm1820 = vcmp.gt.f32.partialorder %v1804, 0.0
    %vm1821 = vcmp.gt.f32.partialorder %v1805, 0.0
    %vm1822 = vcmp.gt.f32.partialorder %v1806, 0.0
    %vm1823 = vcmp.gt.f32.partialorder %v1807, 0.0
    %vm1824 = vcmp.gt.f32.partialorder %v1808, 0.0
    %vm1825 = vcmp.gt.f32.partialorder %v1809, 0.0
    %vm1826 = vcmp.gt.f32.partialorder %v1810, 0.0
    %vm1827 = vcmp.gt.f32.partialorder %v1811, 0.0
    %vm1828 = vcmp.gt.f32.partialorder %v1812, 0.0
    %vm1829 = vcmp.gt.f32.partialorder %v1813, 0.0
    %vm1830 = vcmp.gt.f32.partialorder %v1814, 0.0
    %vm1831 = vcmp.gt.f32.partialorder %v1815, 0.0
    %v1832 = vmul.f32 %v1800, 0.01
    %v1833 = vmul.f32 %v1801, 0.01
    %v1834 = vmul.f32 %v1802, 0.01
    %v1835 = vmul.f32 %v1803, 0.01
    %v1836 = vmul.f32 %v1804, 0.01
    %v1837 = vmul.f32 %v1805, 0.01
    %v1838 = vmul.f32 %v1806, 0.01
    %v1839 = vmul.f32 %v1807, 0.01
    %v1840 = vmul.f32 %v1808, 0.01
    %v1841 = vmul.f32 %v1809, 0.01
    %v1842 = vmul.f32 %v1810, 0.01
    %v1843 = vmul.f32 %v1811, 0.01
    %v1844 = vmul.f32 %v1812, 0.01
    %v1845 = vmul.f32 %v1813, 0.01
    %v1846 = vmul.f32 %v1814, 0.01
    %v1847 = vmul.f32 %v1815, 0.01
    %v1848 = vsel %vm1816, %v1800, %v1832
    %v1849 = vsel %vm1817, %v1801, %v1833
    %v1850 = vsel %vm1818, %v1802, %v1834
    %v1851 = vsel %vm1819, %v1803, %v1835
    %v1852 = vsel %vm1820, %v1804, %v1836
    %v1853 = vsel %vm1821, %v1805, %v1837
    %v1854 = vsel %vm1822, %v1806, %v1838
    %v1855 = vsel %vm1823, %v1807, %v1839
    %v1856 = vsel %vm1824, %v1808, %v1840
    %v1857 = vsel %vm1825, %v1809, %v1841
    %v1858 = vsel %vm1826, %v1810, %v1842
    %v1859 = vsel %vm1827, %v1811, %v1843
    %v1860 = vsel %vm1828, %v1812, %v1844
    %v1861 = vsel %vm1829, %v1813, %v1845
    %v1862 = vsel %vm1830, %v1814, %v1846
    %v1863 = vsel %vm1831, %v1815, %v1847
    %v1864 = vpack.c.bf16 %v1848, %v1848
    %v1865 = vpack.c.bf16 %v1849, %v1849
    %v1866 = vpack.c.bf16 %v1850, %v1850
    %v1867 = vpack.c.bf16 %v1851, %v1851
    %v1868 = vpack.c.bf16 %v1852, %v1852
    %v1869 = vpack.c.bf16 %v1853, %v1853
    %v1870 = vpack.c.bf16 %v1854, %v1854
    %v1871 = vpack.c.bf16 %v1855, %v1855
    %v1872 = vpack.c.bf16 %v1856, %v1856
    %v1873 = vpack.c.bf16 %v1857, %v1857
    %v1874 = vpack.c.bf16 %v1858, %v1858
    %v1875 = vpack.c.bf16 %v1859, %v1859
    %v1876 = vpack.c.bf16 %v1860, %v1860
    %v1877 = vpack.c.bf16 %v1861, %v1861
    %v1878 = vpack.c.bf16 %v1862, %v1862
    %v1879 = vpack.c.bf16 %v1863, %v1863
    %v1896 = vunpack.c.l.b16 %v1864
    %v1897 = vunpack.c.l.b16 %v1865
    %v1898 = vunpack.c.l.b16 %v1866
    %v1899 = vunpack.c.l.b16 %v1867
    %v1900 = vunpack.c.l.b16 %v1868
    %v1901 = vunpack.c.l.b16 %v1869
    %v1902 = vunpack.c.l.b16 %v1870
    %v1903 = vunpack.c.l.b16 %v1871
    %v1904 = vunpack.c.l.b16 %v1872
    %v1905 = vunpack.c.l.b16 %v1873
    %v1906 = vunpack.c.l.b16 %v1874
    %v1907 = vunpack.c.l.b16 %v1875
    %v1908 = vunpack.c.l.b16 %v1876
    %v1909 = vunpack.c.l.b16 %v1877
    %v1910 = vunpack.c.l.b16 %v1878
    %v1911 = vunpack.c.l.b16 %v1879
    %v1912 = vpack.c.b16 %v1897, %v1896
    %v1913 = vpack.c.b16 %v1899, %v1898
    %v1914 = vpack.c.b16 %v1901, %v1900
    %v1915 = vpack.c.b16 %v1903, %v1902
    %v1916 = vpack.c.b16 %v1905, %v1904
    %v1917 = vpack.c.b16 %v1907, %v1906
    %v1918 = vpack.c.b16 %v1909, %v1908
    %v1919 = vpack.c.b16 %v1911, %v1910
    %1928 = vst [vmem:[#allocation11] sm:$0xff] %v1912
    %1929 = vst [vmem:[#allocation11 + $0x8] sm:$0xff] %v1913
    %1930 = vst [vmem:[#allocation11 + $0x10] sm:$0xff] %v1914
    %1931 = vst [vmem:[#allocation11 + $0x18] sm:$0xff] %v1915
    %1932 = vst [vmem:[#allocation11 + $0x20] sm:$0xff] %v1916
    %1933 = vst [vmem:[#allocation11 + $0x28] sm:$0xff] %v1917
    %1934 = vst [vmem:[#allocation11 + $0x30] sm:$0xff] %v1918
    %1935 = vst [vmem:[#allocation11 + $0x38] sm:$0xff] %v1919
    // Predicated region
    $region62: #{tpu_custom_call.1} parent=1 // pred_check
      _
    $region63: #{tpu_custom_call.1} parent=1 // pred_check_branch
      %1937 = sbr.rel (0) target = $region65
    $region64: #{tpu_custom_call.1} parent=1 // pred_region
      %s1939 = ssub.s32 1024, 1024
      %1940 = vsyncadd [#allocation4], %s1939
      %s1941 = sshll.u32 [#allocation11], 4
      %s1942 = int_to_ptr.vmem [resolvable:$true] %s1941
      %1947 = dma.vmem_to_hbm [thread:$0]  %s1942, 1024, %s10, [#allocation4], 128, 128, 8
    $region65: #{tpu_custom_call.1} parent=1 // pred_fallthru
      _
    // Predicated region
    $region66: #{tpu_custom_call.1} parent=1 // pred_check
      _
    $region67: #{tpu_custom_call.1} parent=1 // pred_check_branch
      %1949 = sbr.rel (0) target = $region69
    $region68: #{tpu_custom_call.1} parent=1 // pred_region
      %1950 = dma.done [#allocation4], 1024
    $region69: #{tpu_custom_call.1} parent=1 // pred_fallthru
      _
    %1951 = vsyncpa [#allocation3], 1
    %1952 = vsyncpa [#allocation6], 1
    %1953 = vsyncpa [#allocation9], 1
    %1954 = vsyncpa [#allocation4], 1

</llo_original>
